<compile_context>
chip_gen: v7x
topology: tpu7x:2x2x1
jax: 0.10.0
libtpu: 0.0.40
codegen_flags: <defaults>
</compile_context>

<pallas_src>
import jax
import jax.numpy as jnp
from jax.experimental import pallas as pl
from jax.experimental.pallas import tpu as pltpu

HIDDEN = 512
BN_EPS = 1e-5


def _round_up(n, m):
    return ((n + m - 1) // m) * m


def _default_epilogue_dtype():
    """bf16 epilogue on bf16-VALU chips (v6e/v7x); f32 on v5-class chips."""
    try:
        kind = jax.devices()[0].device_kind.lower()
    except Exception:
        kind = ""
    return jnp.float32 if "v5" in kind else jnp.bfloat16


def _pick_batch_tile(B, block_b, align=128, min_steps=2):
    """Pick the batch tile: big (amortize per-step overhead), multiple of
    `align` for full MXU M tiles, and >= min_steps grid steps when the batch
    is large enough (so v7x's two TensorCores both get work)."""
    if B <= align:
        # Tiny batch: single step, minimal padding (bf16 sublane multiple).
        return _round_up(max(B, 16), 16)
    target = pl.cdiv(_round_up(B, align), min_steps)
    bb = min(int(block_b), int(target))
    return max(_round_up(bb, align), align)


def _make_sdn_kernel(epi_dtype):
    """epi_dtype: dtype for the shift+ReLU epilogues (bf16 on v6e/v7x)."""

    def sdn_kernel(x_ref, w1_ref, t1_ref, w2_ref, t2_ref, w3_ref, b3_ref, o_ref):
        # block 1: Linear (BN1 scale pre-folded into w1) + BN1 shift + ReLU
        h = jnp.dot(x_ref[...], w1_ref[...], preferred_element_type=jnp.float32)
        h = jnp.maximum(h.astype(epi_dtype) + t1_ref[...], 0.0)  # Dropout: id

        # block 2: Linear (BN2 scale pre-folded into w2) + BN2 shift + ReLU
        h = jnp.dot(h.astype(jnp.bfloat16), w2_ref[...],
                    preferred_element_type=jnp.float32)
        h = jnp.maximum(h.astype(epi_dtype) + t2_ref[...], 0.0)

        # head: Linear + bias + Sigmoid (tanh form: single EUP op, no overflow)
        logits = jnp.dot(h.astype(jnp.bfloat16), w3_ref[...],
                         preferred_element_type=jnp.float32) + b3_ref[...]
        o_ref[...] = (0.5 * jnp.tanh(0.5 * logits) + 0.5).astype(o_ref.dtype)

    return sdn_kernel


def sdn_forward(x, params, *, block_b=2048, epilogue_dtype=None,
                out_dtype=jnp.float32):
    """x: [B, F] float32. params: dict from init_params. Returns [B, num_tags]."""
    B, F = x.shape
    T = params["w3"].shape[1]
    if epilogue_dtype is None:
        epilogue_dtype = _default_epilogue_dtype()

    # Fold the eval-mode BN scale into the weight columns (exact, done once);
    # keep only the additive shifts for the kernel. Cast weights to bf16.
    w1 = (params["w1"] * params["s1"]).astype(jnp.bfloat16)       # [F, 512]
    w2 = (params["w2"] * params["s2"]).astype(jnp.bfloat16)       # [512, 512]
    t1 = params["t1"].astype(epilogue_dtype)                      # [1, 512]
    t2 = params["t2"].astype(epilogue_dtype)                      # [1, 512]

    # Lane-align the tag axis so the output store path is unmasked.
    Tp = _round_up(T, 128)
    w3 = params["w3"]
    b3 = params["b3"]
    if Tp != T:
        w3 = jnp.pad(w3, ((0, 0), (0, Tp - T)))
        b3 = jnp.pad(b3, ((0, 0), (0, Tp - T)))
    w3 = w3.astype(jnp.bfloat16)                                  # [512, Tp]
    b3 = b3.astype(jnp.float32)                                   # [1, Tp]

    # Batch tile selection (big, 128-aligned, >=2 steps when batch allows).
    bb = _pick_batch_tile(B, block_b)

    # Size-aware VMEM budget: resident weights + pipelined x / out tiles.
    out_itemsize = jnp.dtype(out_dtype).itemsize
    t_itemsize = jnp.dtype(epilogue_dtype).itemsize
    w_bytes = (w1.size + w2.size + w3.size) * 2
    vec_bytes = (t1.size + t2.size) * t_itemsize + b3.size * 4
    x_buffers = 3 if F >= 2048 else 2          # deeper pipeline for big F DMA

    def vmem_need(bb_):
        return (w_bytes + vec_bytes
                + bb_ * F * 2 * x_buffers
                + bb_ * Tp * out_itemsize * 2)

    VMEM_CAP = 56 * 1024 * 1024   # conservative: v7x has 64 MiB physical / TC
    while vmem_need(bb) > VMEM_CAP and bb > 128:
        bb = max(128, _round_up(bb // 2, 128))
    vmem_limit = int(min(max(vmem_need(bb) + (8 << 20), 32 << 20), VMEM_CAP))

    Bp = _round_up(B, bb)
    x_b = x.astype(jnp.bfloat16)
    if Bp != B:
        x_b = jnp.pad(x_b, ((0, Bp - B), (0, 0)))

    grid = (Bp // bb,)

    def vmem_whole():
        # Whole-array, VMEM-resident parameter: copied in once, not
        # double-buffered by the batch pipeline.
        return pl.BlockSpec(memory_space=pltpu.MemorySpace.VMEM)

    if x_buffers > 2:
        x_spec = pl.BlockSpec((bb, F), lambda i: (i, 0),
                              pipeline_mode=pl.Buffered(x_buffers))
    else:
        x_spec = pl.BlockSpec((bb, F), lambda i: (i, 0))

    flops = 2 * Bp * (F * HIDDEN + HIDDEN * HIDDEN + HIDDEN * Tp)
    bytes_accessed = (x_b.size * 2 + w_bytes + vec_bytes + Bp * Tp * out_itemsize)

    out = pl.pallas_call(
        _make_sdn_kernel(epilogue_dtype),
        out_shape=jax.ShapeDtypeStruct((Bp, Tp), out_dtype),
        grid_spec=pltpu.PrefetchScalarGridSpec(
            num_scalar_prefetch=0,
            grid=grid,
            in_specs=[
                x_spec,          # x tile (pipelined)
                vmem_whole(),    # w1 (BN1 scale folded)
                vmem_whole(),    # t1
                vmem_whole(),    # w2 (BN2 scale folded)
                vmem_whole(),    # t2
                vmem_whole(),    # w3
                vmem_whole(),    # b3
            ],
            out_specs=pl.BlockSpec((bb, Tp), lambda i: (i, 0)),
        ),
        compiler_params=pltpu.CompilerParams(
            dimension_semantics=("parallel",),
            vmem_limit_bytes=vmem_limit,
        ),
        cost_estimate=pl.CostEstimate(
            flops=int(flops),
            transcendentals=int(Bp * Tp),
            bytes_accessed=int(bytes_accessed),
        ),
    )(x_b, w1, t1, w2, t2, w3, b3)

    # Drop padded rows (garbage sigmoids) and padded tag columns.
    return out[:B, :T]


def init_params(key, cnn_features_size, num_tags):
    """Deterministic synthetic parameters (no checkpoint load)."""
    ks = jax.random.split(key, 12)
    # Linear weights, stored as [in, out] (= PyTorch weight.T).
    w1 = jax.random.normal(ks[0], (cnn_features_size, HIDDEN), jnp.float32) * 0.02
    w2 = jax.random.normal(ks[1], (HIDDEN, HIDDEN), jnp.float32) * 0.02
    w3 = jax.random.normal(ks[2], (HIDDEN, num_tags), jnp.float32) * 0.02
    b3 = jax.random.normal(ks[3], (1, num_tags), jnp.float32) * 0.02
    # BatchNorm1d affine params + non-trivial running stats (eval mode).
    g1 = 1.0 + 0.1 * jax.random.normal(ks[4], (HIDDEN,), jnp.float32)
    be1 = 0.1 * jax.random.normal(ks[5], (HIDDEN,), jnp.float32)
    g2 = 1.0 + 0.1 * jax.random.normal(ks[6], (HIDDEN,), jnp.float32)
    be2 = 0.1 * jax.random.normal(ks[7], (HIDDEN,), jnp.float32)
    rm1 = 0.05 * jax.random.normal(ks[8], (HIDDEN,), jnp.float32)
    rv1 = 1.0 + 0.1 * jnp.abs(jax.random.normal(ks[9], (HIDDEN,), jnp.float32))
    rm2 = 0.05 * jax.random.normal(ks[10], (HIDDEN,), jnp.float32)
    rv2 = 1.0 + 0.1 * jnp.abs(jax.random.normal(ks[11], (HIDDEN,), jnp.float32))
    # Fold BN: gamma*(x-mean)/sqrt(var+eps)+beta  ==  x*scale + shift
    s1 = g1 / jnp.sqrt(rv1 + BN_EPS)
    t1 = be1 - rm1 * s1
    s2 = g2 / jnp.sqrt(rv2 + BN_EPS)
    t2 = be2 - rm2 * s2
    return dict(
        w1=w1, s1=s1.reshape(1, HIDDEN), t1=t1.reshape(1, HIDDEN),
        w2=w2, s2=s2.reshape(1, HIDDEN), t2=t2.reshape(1, HIDDEN),
        w3=w3, b3=b3,
    )


def sdn_reference(x, p):
    """Pure f32 JAX reference (unfolded weights, exact sigmoid)."""
    h = jnp.maximum(x @ p["w1"] * p["s1"] + p["t1"], 0.0)
    h = jnp.maximum(h @ p["w2"] * p["s2"] + p["t2"], 0.0)
    return jax.nn.sigmoid(h @ p["w3"] + p["b3"])


if __name__ == "__main__":
    cnn_features_size = 256
    num_tags = 100   # deliberately not lane-aligned: exercises tag padding
    batch = 10       # deliberately not a tile multiple: exercises row padding

    key = jax.random.PRNGKey(0)
    kx, kp = jax.random.split(key)
    x = jax.random.normal(kx, (batch, cnn_features_size), jnp.float32)
    params = init_params(kp, cnn_features_size, num_tags)

    out = jax.block_until_ready(sdn_forward(x, params))
    ref = sdn_reference(x, params)

    assert out.shape == (batch, num_tags)
    # bf16 weights/activations in the kernel vs. f32 reference -> loose tol.
    max_err = float(jnp.max(jnp.abs(out - ref)))
    assert jnp.allclose(out, ref, atol=2e-2, rtol=2e-2), max_err
    print("KERNEL_OK")
</pallas_src>

<mosaic_0001>
module attributes {stable_mosaic.version = 11 : i64} {
  func.func @sdn_kernel(%arg0: i32, %arg1: memref<16x256xbf16, #tpu.memory_space<vmem>>, %arg2: memref<256x512xbf16, #tpu.memory_space<vmem>>, %arg3: memref<1x512xbf16, #tpu.memory_space<vmem>>, %arg4: memref<512x512xbf16, #tpu.memory_space<vmem>>, %arg5: memref<1x512xbf16, #tpu.memory_space<vmem>>, %arg6: memref<512x128xbf16, #tpu.memory_space<vmem>>, %arg7: memref<1x128xf32, #tpu.memory_space<vmem>>, %arg8: memref<16x128xf32, #tpu.memory_space<vmem>>) attributes {dimension_semantics = [#tpu.dimension_semantics<parallel>], iteration_bounds = array<i64: 1>, scalar_prefetch = 0 : i64, scratch_operands = 0 : i64, tpu.core_type = #tpu.core_type<tc>, window_params = [{transform_indices = @transform_0, window_bounds = array<i64: 16, 256>}, {pipeline_mode = #tpu.pipeline_mode<synchronous>, transform_indices = @transform_1, window_bounds = array<i64: 256, 512>}, {pipeline_mode = #tpu.pipeline_mode<synchronous>, transform_indices = @transform_2, window_bounds = array<i64: 1, 512>}, {pipeline_mode = #tpu.pipeline_mode<synchronous>, transform_indices = @transform_3, window_bounds = array<i64: 512, 512>}, {pipeline_mode = #tpu.pipeline_mode<synchronous>, transform_indices = @transform_4, window_bounds = array<i64: 1, 512>}, {pipeline_mode = #tpu.pipeline_mode<synchronous>, transform_indices = @transform_5, window_bounds = array<i64: 512, 128>}, {pipeline_mode = #tpu.pipeline_mode<synchronous>, transform_indices = @transform_6, window_bounds = array<i64: 1, 128>}, {transform_indices = @transform_7, window_bounds = array<i64: 16, 128>}]} {
    %c0 = arith.constant 0 : index
    %c0_0 = arith.constant 0 : index
    %0 = vector.load %arg1[%c0, %c0_0] : memref<16x256xbf16, #tpu.memory_space<vmem>>, vector<16x256xbf16>
    %c0_1 = arith.constant 0 : index
    %c0_2 = arith.constant 0 : index
    %1 = vector.load %arg2[%c0_1, %c0_2] : memref<256x512xbf16, #tpu.memory_space<vmem>>, vector<256x512xbf16>
    %cst = arith.constant dense<0.000000e+00> : vector<16x512xf32>
    %2 = tpu.matmul %0, %1, %cst {dimension_numbers = #tpu.dot_dimension_numbers<[1], [0], [0], [1], [0, 0, 1, 1], [], []>} : vector<16x256xbf16>, vector<256x512xbf16>, vector<16x512xf32> -> vector<16x512xf32>
    %3 = arith.truncf %2 : vector<16x512xf32> to vector<16x512xbf16>
    %c0_3 = arith.constant 0 : index
    %c0_4 = arith.constant 0 : index
    %4 = vector.load %arg3[%c0_3, %c0_4] : memref<1x512xbf16, #tpu.memory_space<vmem>>, vector<1x512xbf16>
    %5 = vector.broadcast %4 : vector<1x512xbf16> to vector<16x512xbf16>
    %6 = arith.addf %3, %5 : vector<16x512xbf16>
    %cst_5 = arith.constant 0.000000e+00 : bf16
    %7 = vector.broadcast %cst_5 : bf16 to vector<16x512xbf16>
    %8 = arith.maximumf %6, %7 : vector<16x512xbf16>
    %c0_6 = arith.constant 0 : index
    %c0_7 = arith.constant 0 : index
    %9 = vector.load %arg4[%c0_6, %c0_7] : memref<512x512xbf16, #tpu.memory_space<vmem>>, vector<512x512xbf16>
    %cst_8 = arith.constant dense<0.000000e+00> : vector<16x512xf32>
    %10 = tpu.matmul %8, %9, %cst_8 {dimension_numbers = #tpu.dot_dimension_numbers<[1], [0], [0], [1], [0, 0, 1, 1], [], []>} : vector<16x512xbf16>, vector<512x512xbf16>, vector<16x512xf32> -> vector<16x512xf32>
    %11 = arith.truncf %10 : vector<16x512xf32> to vector<16x512xbf16>
    %c0_9 = arith.constant 0 : index
    %c0_10 = arith.constant 0 : index
    %12 = vector.load %arg5[%c0_9, %c0_10] : memref<1x512xbf16, #tpu.memory_space<vmem>>, vector<1x512xbf16>
    %13 = vector.broadcast %12 : vector<1x512xbf16> to vector<16x512xbf16>
    %14 = arith.addf %11, %13 : vector<16x512xbf16>
    %cst_11 = arith.constant 0.000000e+00 : bf16
    %15 = vector.broadcast %cst_11 : bf16 to vector<16x512xbf16>
    %16 = arith.maximumf %14, %15 : vector<16x512xbf16>
    %c0_12 = arith.constant 0 : index
    %c0_13 = arith.constant 0 : index
    %17 = vector.load %arg6[%c0_12, %c0_13] : memref<512x128xbf16, #tpu.memory_space<vmem>>, vector<512x128xbf16>
    %cst_14 = arith.constant dense<0.000000e+00> : vector<16x128xf32>
    %18 = tpu.matmul %16, %17, %cst_14 {dimension_numbers = #tpu.dot_dimension_numbers<[1], [0], [0], [1], [0, 0, 1, 1], [], []>} : vector<16x512xbf16>, vector<512x128xbf16>, vector<16x128xf32> -> vector<16x128xf32>
    %c0_15 = arith.constant 0 : index
    %c0_16 = arith.constant 0 : index
    %19 = vector.load %arg7[%c0_15, %c0_16] : memref<1x128xf32, #tpu.memory_space<vmem>>, vector<1x128xf32>
    %20 = vector.broadcast %19 : vector<1x128xf32> to vector<16x128xf32>
    %21 = arith.addf %18, %20 : vector<16x128xf32>
    %cst_17 = arith.constant 5.000000e-01 : f32
    %22 = vector.broadcast %cst_17 : f32 to vector<16x128xf32>
    %23 = arith.mulf %22, %21 : vector<16x128xf32>
    %24 = math.tanh %23 : vector<16x128xf32>
    %cst_18 = arith.constant 5.000000e-01 : f32
    %25 = vector.broadcast %cst_18 : f32 to vector<16x128xf32>
    %26 = arith.mulf %25, %24 : vector<16x128xf32>
    %cst_19 = arith.constant 5.000000e-01 : f32
    %27 = vector.broadcast %cst_19 : f32 to vector<16x128xf32>
    %28 = arith.addf %26, %27 : vector<16x128xf32>
    %c0_20 = arith.constant 0 : index
    %c0_21 = arith.constant 0 : index
    %29 = vector.load %arg8[%c0_20, %c0_21] : memref<16x128xf32, #tpu.memory_space<vmem>>, vector<16x128xf32>
    tpu.vector_store %arg8[%c0_20, %c0_21], %28 {strides = array<i32>} : memref<16x128xf32, #tpu.memory_space<vmem>>, vector<16x128xf32>,
    return
  }
  func.func @transform_0(%arg0: i32) -> (i32, i32) {
    %c0_i32 = arith.constant 0 : i32
    %c0_i32_0 = arith.constant 0 : i32
    return %arg0, %c0_i32 : i32, i32
  }
  func.func @transform_1(%arg0: i32) -> (i32, i32) {
    %c0_i32 = arith.constant 0 : i32
    %c0_i32_0 = arith.constant 0 : i32
    %c0_i32_1 = arith.constant 0 : i32
    return %c0_i32, %c0_i32_0 : i32, i32
  }
  func.func @transform_2(%arg0: i32) -> (i32, i32) {
    %c0_i32 = arith.constant 0 : i32
    %c0_i32_0 = arith.constant 0 : i32
    %c0_i32_1 = arith.constant 0 : i32
    return %c0_i32, %c0_i32_0 : i32, i32
  }
  func.func @transform_3(%arg0: i32) -> (i32, i32) {
    %c0_i32 = arith.constant 0 : i32
    %c0_i32_0 = arith.constant 0 : i32
    %c0_i32_1 = arith.constant 0 : i32
    return %c0_i32, %c0_i32_0 : i32, i32
  }
  func.func @transform_4(%arg0: i32) -> (i32, i32) {
    %c0_i32 = arith.constant 0 : i32
    %c0_i32_0 = arith.constant 0 : i32
    %c0_i32_1 = arith.constant 0 : i32
    return %c0_i32, %c0_i32_0 : i32, i32
  }
  func.func @transform_5(%arg0: i32) -> (i32, i32) {
    %c0_i32 = arith.constant 0 : i32
    %c0_i32_0 = arith.constant 0 : i32
    %c0_i32_1 = arith.constant 0 : i32
    return %c0_i32, %c0_i32_0 : i32, i32
  }
  func.func @transform_6(%arg0: i32) -> (i32, i32) {
    %c0_i32 = arith.constant 0 : i32
    %c0_i32_0 = arith.constant 0 : i32
    %c0_i32_1 = arith.constant 0 : i32
    return %c0_i32, %c0_i32_0 : i32, i32
  }
  func.func @transform_7(%arg0: i32) -> (i32, i32) {
    %c0_i32 = arith.constant 0 : i32
    %c0_i32_0 = arith.constant 0 : i32
    return %arg0, %c0_i32 : i32, i32
  }
}

</mosaic_0001>

<llo_original>
// kernel: tpu_custom_call.1
$region0: #{tpu_custom_call.1}
  #allocation0 [shape = 'u32[]', space=smem, size = 0x4, offset = 0x4, fixed_abs, tag = 'smem constant byte address 0x4 - core index']
  #allocation1 [shape = 'u32[144,128]{1,0:T(1,128)}', space=vmem, size = 0x12000, scoped, tag = 'internal scratch']
  %s0 = inlined_call_operand.hbm [shape: bf16[16,256], index: 0, kind: input, shape index: {}]
  %s1 = inlined_call_operand.hbm [shape: bf16[256,512], index: 1, kind: input, shape index: {}]
  %s2 = inlined_call_operand.vmem [shape: bf16[1,512], index: 2, kind: input, shape index: {}]
  %s3 = inlined_call_operand.hbm [shape: bf16[512,512], index: 3, kind: input, shape index: {}]
  %s4 = inlined_call_operand.vmem [shape: bf16[1,512], index: 4, kind: input, shape index: {}]
  %s5 = inlined_call_operand.hbm [shape: bf16[512,128], index: 5, kind: input, shape index: {}]
  %s6 = inlined_call_operand.vmem [shape: f32[1,128], index: 6, kind: input, shape index: {}]
  %s7 = inlined_call_operand.hbm [shape: f32[16,128], index: 7, kind: output, shape index: {}]
  %s8 = sld [smem:[#allocation0]]
  $region54: #{tpu_custom_call.1} parent=0
    _
  %s10 = ssub.s32 1, %s8
  %s11 = scalar_select 0, %s10, %s8
  $region1: #{tpu_custom_call.1} parent=0
    #allocation2 [shape = 'u8[8192]{0}', space=vmem, size = 0x2000, scoped, tag = 'input window, operand 0, single buffered']
    #allocation3 [shape = 's32[1]{0}', space=sflag, size = 0x4, scoped, tag = 'scoped memory for tpu_custom_call.1']
    #allocation4 [shape = 's32[1]{0}', space=sflag, size = 0x4, scoped, tag = 'scoped memory for tpu_custom_call.1']
    #allocation5 [shape = 'u8[262144]{0}', space=vmem, size = 0x40000, scoped, tag = 'input window, operand 1, single buffered']
    #allocation6 [shape = 's32[1]{0}', space=sflag, size = 0x4, scoped, tag = 'scoped memory for tpu_custom_call.1']
    #allocation7 [shape = 'u8[524288]{0}', space=vmem, size = 0x80000, scoped, tag = 'input window, operand 3, single buffered']
    #allocation8 [shape = 'u8[131072]{0}', space=vmem, size = 0x20000, scoped, tag = 'input window, operand 5, single buffered']
    #allocation9 [shape = 's32[1]{0}', space=sflag, size = 0x4, scoped, tag = 'scoped memory for tpu_custom_call.1']
    #allocation10 [shape = 'u8[8192]{0}', space=vmem, size = 0x2000, scoped, tag = 'output window, operand 0, single buffered']
    %12 = vsyncpa [#allocation3], 0
    %13 = vsyncpa [#allocation6], 0
    %14 = vsyncpa [#allocation9], 0
    %15 = vsyncpa [#allocation4], 0
    // Predicated region
    $region2: #{tpu_custom_call.1} parent=1 // pred_check
      _
    $region3: #{tpu_custom_call.1} parent=1 // pred_check_branch
      %17 = sbr.rel (0) target = $region5
    $region4: #{tpu_custom_call.1} parent=1 // pred_region
      %s19 = ssub.s32 256, 256
      %20 = vsyncadd [#allocation3], %s19
      %s21 = sshll.u32 [#allocation2], 4
      %s22 = int_to_ptr.vmem [resolvable:$true] %s21
      %27 = dma.hbm_to_vmem [thread:$0]  %s0, 256, %s22, [#allocation3], 128, 128, 8
    $region5: #{tpu_custom_call.1} parent=1 // pred_fallthru
      _
    // Predicated region
    $region6: #{tpu_custom_call.1} parent=1 // pred_check
      _
    $region7: #{tpu_custom_call.1} parent=1 // pred_check_branch
      %29 = sbr.rel (0) target = $region9
    $region8: #{tpu_custom_call.1} parent=1 // pred_region
      %s31 = ssub.s32 8192, 8192
      %32 = vsyncadd [#allocation6], %s31
      %s33 = sshll.u32 [#allocation5], 4
      %s34 = int_to_ptr.vmem [resolvable:$true] %s33
      %39 = dma.hbm_to_vmem [thread:$0]  %s1, 8192, %s34, [#allocation6], 256, 256, 16
    $region9: #{tpu_custom_call.1} parent=1 // pred_fallthru
      _
    // Predicated region
    $region10: #{tpu_custom_call.1} parent=1 // pred_check
      _
    $region11: #{tpu_custom_call.1} parent=1 // pred_check_branch
      %41 = sbr.rel (0) target = $region13
    $region12: #{tpu_custom_call.1} parent=1 // pred_region
      _
    $region13: #{tpu_custom_call.1} parent=1 // pred_fallthru
      _
    // Predicated region
    $region14: #{tpu_custom_call.1} parent=1 // pred_check
      _
    $region15: #{tpu_custom_call.1} parent=1 // pred_check_branch
      %43 = sbr.rel (0) target = $region17
    $region16: #{tpu_custom_call.1} parent=1 // pred_region
      %s45 = ssub.s32 16384, 16384
      %46 = vsyncadd [#allocation6], %s45
      %s47 = sshll.u32 [#allocation7], 4
      %s48 = int_to_ptr.vmem [resolvable:$true] %s47
      %53 = dma.hbm_to_vmem [thread:$0]  %s3, 16384, %s48, [#allocation6], 256, 256, 16
    $region17: #{tpu_custom_call.1} parent=1 // pred_fallthru
      _
    // Predicated region
    $region18: #{tpu_custom_call.1} parent=1 // pred_check
      _
    $region19: #{tpu_custom_call.1} parent=1 // pred_check_branch
      %55 = sbr.rel (0) target = $region21
    $region20: #{tpu_custom_call.1} parent=1 // pred_region
      _
    $region21: #{tpu_custom_call.1} parent=1 // pred_fallthru
      _
    // Predicated region
    $region22: #{tpu_custom_call.1} parent=1 // pred_check
      _
    $region23: #{tpu_custom_call.1} parent=1 // pred_check_branch
      %57 = sbr.rel (0) target = $region25
    $region24: #{tpu_custom_call.1} parent=1 // pred_region
      %s59 = ssub.s32 4096, 4096
      %60 = vsyncadd [#allocation9], %s59
      %s61 = sshll.u32 [#allocation8], 4
      %s62 = int_to_ptr.vmem [resolvable:$true] %s61
      %67 = dma.hbm_to_vmem [thread:$0]  %s5, 4096, %s62, [#allocation9], 64, 64, 4
    $region25: #{tpu_custom_call.1} parent=1 // pred_fallthru
      _
    // Predicated region
    $region26: #{tpu_custom_call.1} parent=1 // pred_check
      _
    $region27: #{tpu_custom_call.1} parent=1 // pred_check_branch
      %69 = sbr.rel (0) target = $region29
    $region28: #{tpu_custom_call.1} parent=1 // pred_region
      _
    $region29: #{tpu_custom_call.1} parent=1 // pred_fallthru
      _
    // Predicated region
    $region30: #{tpu_custom_call.1} parent=1 // pred_check
      _
    $region31: #{tpu_custom_call.1} parent=1 // pred_check_branch
      %71 = sbr.rel (0) target = $region33
    $region32: #{tpu_custom_call.1} parent=1 // pred_region
      %72 = dma.done [#allocation3], 256
    $region33: #{tpu_custom_call.1} parent=1 // pred_fallthru
      _
    // Predicated region
    $region34: #{tpu_custom_call.1} parent=1 // pred_check
      _
    $region35: #{tpu_custom_call.1} parent=1 // pred_check_branch
      %74 = sbr.rel (0) target = $region37
    $region36: #{tpu_custom_call.1} parent=1 // pred_region
      %75 = dma.done [#allocation6], 8192
    $region37: #{tpu_custom_call.1} parent=1 // pred_fallthru
      _
    // Predicated region
    $region38: #{tpu_custom_call.1} parent=1 // pred_check
      _
    $region39: #{tpu_custom_call.1} parent=1 // pred_check_branch
      %77 = sbr.rel (0) target = $region41
    $region40: #{tpu_custom_call.1} parent=1 // pred_region
      %78 = dma.done [#allocation6], 16384
    $region41: #{tpu_custom_call.1} parent=1 // pred_fallthru
      _
    // Predicated region
    $region42: #{tpu_custom_call.1} parent=1 // pred_check
      _
    $region43: #{tpu_custom_call.1} parent=1 // pred_check_branch
      %80 = sbr.rel (0) target = $region45
    $region44: #{tpu_custom_call.1} parent=1 // pred_region
      %81 = dma.done [#allocation9], 4096
    $region45: #{tpu_custom_call.1} parent=1 // pred_fallthru
      _
    %v83 = vld [vmem:[#allocation2] sm:$0xff]
    %v84 = vld [vmem:[#allocation2 + $0x8] sm:$0xff]
    %v85 = vld [vmem:[#allocation5] sm:$0xff]
    %v86 = vld [vmem:[#allocation5 + $0x8] sm:$0xff]
    %v87 = vld [vmem:[#allocation5 + $0x10] sm:$0xff]
    %v88 = vld [vmem:[#allocation5 + $0x18] sm:$0xff]
    %v89 = vld [vmem:[#allocation5 + $0x20] sm:$0xff]
    %v90 = vld [vmem:[#allocation5 + $0x28] sm:$0xff]
    %v91 = vld [vmem:[#allocation5 + $0x30] sm:$0xff]
    %v92 = vld [vmem:[#allocation5 + $0x38] sm:$0xff]
    %v93 = vld [vmem:[#allocation5 + $0x40] sm:$0xff]
    %v94 = vld [vmem:[#allocation5 + $0x48] sm:$0xff]
    %v95 = vld [vmem:[#allocation5 + $0x50] sm:$0xff]
    %v96 = vld [vmem:[#allocation5 + $0x58] sm:$0xff]
    %v97 = vld [vmem:[#allocation5 + $0x60] sm:$0xff]
    %v98 = vld [vmem:[#allocation5 + $0x68] sm:$0xff]
    %v99 = vld [vmem:[#allocation5 + $0x70] sm:$0xff]
    %v100 = vld [vmem:[#allocation5 + $0x78] sm:$0xff]
    %v101 = vld [vmem:[#allocation5 + $0x80] sm:$0xff]
    %v102 = vld [vmem:[#allocation5 + $0x88] sm:$0xff]
    %v103 = vld [vmem:[#allocation5 + $0x90] sm:$0xff]
    %v104 = vld [vmem:[#allocation5 + $0x98] sm:$0xff]
    %v105 = vld [vmem:[#allocation5 + $0xa0] sm:$0xff]
    %v106 = vld [vmem:[#allocation5 + $0xa8] sm:$0xff]
    %v107 = vld [vmem:[#allocation5 + $0xb0] sm:$0xff]
    %v108 = vld [vmem:[#allocation5 + $0xb8] sm:$0xff]
    %v109 = vld [vmem:[#allocation5 + $0xc0] sm:$0xff]
    %v110 = vld [vmem:[#allocation5 + $0xc8] sm:$0xff]
    %v111 = vld [vmem:[#allocation5 + $0xd0] sm:$0xff]
    %v112 = vld [vmem:[#allocation5 + $0xd8] sm:$0xff]
    %v113 = vld [vmem:[#allocation5 + $0xe0] sm:$0xff]
    %v114 = vld [vmem:[#allocation5 + $0xe8] sm:$0xff]
    %v115 = vld [vmem:[#allocation5 + $0xf0] sm:$0xff]
    %v116 = vld [vmem:[#allocation5 + $0xf8] sm:$0xff]
    %v117 = vld [vmem:[#allocation5 + $0x100] sm:$0xff]
    %v118 = vld [vmem:[#allocation5 + $0x108] sm:$0xff]
    %v119 = vld [vmem:[#allocation5 + $0x110] sm:$0xff]
    %v120 = vld [vmem:[#allocation5 + $0x118] sm:$0xff]
    %v121 = vld [vmem:[#allocation5 + $0x120] sm:$0xff]
    %v122 = vld [vmem:[#allocation5 + $0x128] sm:$0xff]
    %v123 = vld [vmem:[#allocation5 + $0x130] sm:$0xff]
    %v124 = vld [vmem:[#allocation5 + $0x138] sm:$0xff]
    %v125 = vld [vmem:[#allocation5 + $0x140] sm:$0xff]
    %v126 = vld [vmem:[#allocation5 + $0x148] sm:$0xff]
    %v127 = vld [vmem:[#allocation5 + $0x150] sm:$0xff]
    %v128 = vld [vmem:[#allocation5 + $0x158] sm:$0xff]
    %v129 = vld [vmem:[#allocation5 + $0x160] sm:$0xff]
    %v130 = vld [vmem:[#allocation5 + $0x168] sm:$0xff]
    %v131 = vld [vmem:[#allocation5 + $0x170] sm:$0xff]
    %v132 = vld [vmem:[#allocation5 + $0x178] sm:$0xff]
    %v133 = vld [vmem:[#allocation5 + $0x180] sm:$0xff]
    %v134 = vld [vmem:[#allocation5 + $0x188] sm:$0xff]
    %v135 = vld [vmem:[#allocation5 + $0x190] sm:$0xff]
    %v136 = vld [vmem:[#allocation5 + $0x198] sm:$0xff]
    %v137 = vld [vmem:[#allocation5 + $0x1a0] sm:$0xff]
    %v138 = vld [vmem:[#allocation5 + $0x1a8] sm:$0xff]
    %v139 = vld [vmem:[#allocation5 + $0x1b0] sm:$0xff]
    %v140 = vld [vmem:[#allocation5 + $0x1b8] sm:$0xff]
    %v141 = vld [vmem:[#allocation5 + $0x1c0] sm:$0xff]
    %v142 = vld [vmem:[#allocation5 + $0x1c8] sm:$0xff]
    %v143 = vld [vmem:[#allocation5 + $0x1d0] sm:$0xff]
    %v144 = vld [vmem:[#allocation5 + $0x1d8] sm:$0xff]
    %v145 = vld [vmem:[#allocation5 + $0x1e0] sm:$0xff]
    %v146 = vld [vmem:[#allocation5 + $0x1e8] sm:$0xff]
    %v147 = vld [vmem:[#allocation5 + $0x1f0] sm:$0xff]
    %v148 = vld [vmem:[#allocation5 + $0x1f8] sm:$0xff]
    %v151 = vunpack.c.l.b16 %v83
    %v152 = vunpack.c.h.b16 %v83
    %v153 = vunpack.c.l.b16 %v84
    %v154 = vunpack.c.h.b16 %v84
    %v155 = vpack.c.b16 %v153, %v151
    %v156 = vpack.c.b16 %v154, %v152
    %v223 = vunpack.c.l.b16 %v85
    %v224 = vunpack.c.h.b16 %v85
    %v225 = vunpack.c.l.b16 %v86
    %v226 = vunpack.c.h.b16 %v86
    %v227 = vunpack.c.l.b16 %v87
    %v228 = vunpack.c.h.b16 %v87
    %v229 = vunpack.c.l.b16 %v88
    %v230 = vunpack.c.h.b16 %v88
    %v231 = vunpack.c.l.b16 %v89
    %v232 = vunpack.c.h.b16 %v89
    %v233 = vunpack.c.l.b16 %v90
    %v234 = vunpack.c.h.b16 %v90
    %v235 = vunpack.c.l.b16 %v91
    %v236 = vunpack.c.h.b16 %v91
    %v237 = vunpack.c.l.b16 %v92
    %v238 = vunpack.c.h.b16 %v92
    %v239 = vunpack.c.l.b16 %v93
    %v240 = vunpack.c.h.b16 %v93
    %v241 = vunpack.c.l.b16 %v94
    %v242 = vunpack.c.h.b16 %v94
    %v243 = vunpack.c.l.b16 %v95
    %v244 = vunpack.c.h.b16 %v95
    %v245 = vunpack.c.l.b16 %v96
    %v246 = vunpack.c.h.b16 %v96
    %v247 = vunpack.c.l.b16 %v97
    %v248 = vunpack.c.h.b16 %v97
    %v249 = vunpack.c.l.b16 %v98
    %v250 = vunpack.c.h.b16 %v98
    %v251 = vunpack.c.l.b16 %v99
    %v252 = vunpack.c.h.b16 %v99
    %v253 = vunpack.c.l.b16 %v100
    %v254 = vunpack.c.h.b16 %v100
    %v255 = vunpack.c.l.b16 %v101
    %v256 = vunpack.c.h.b16 %v101
    %v257 = vunpack.c.l.b16 %v102
    %v258 = vunpack.c.h.b16 %v102
    %v259 = vunpack.c.l.b16 %v103
    %v260 = vunpack.c.h.b16 %v103
    %v261 = vunpack.c.l.b16 %v104
    %v262 = vunpack.c.h.b16 %v104
    %v263 = vunpack.c.l.b16 %v105
    %v264 = vunpack.c.h.b16 %v105
    %v265 = vunpack.c.l.b16 %v106
    %v266 = vunpack.c.h.b16 %v106
    %v267 = vunpack.c.l.b16 %v107
    %v268 = vunpack.c.h.b16 %v107
    %v269 = vunpack.c.l.b16 %v108
    %v270 = vunpack.c.h.b16 %v108
    %v271 = vunpack.c.l.b16 %v109
    %v272 = vunpack.c.h.b16 %v109
    %v273 = vunpack.c.l.b16 %v110
    %v274 = vunpack.c.h.b16 %v110
    %v275 = vunpack.c.l.b16 %v111
    %v276 = vunpack.c.h.b16 %v111
    %v277 = vunpack.c.l.b16 %v112
    %v278 = vunpack.c.h.b16 %v112
    %v279 = vunpack.c.l.b16 %v113
    %v280 = vunpack.c.h.b16 %v113
    %v281 = vunpack.c.l.b16 %v114
    %v282 = vunpack.c.h.b16 %v114
    %v283 = vunpack.c.l.b16 %v115
    %v284 = vunpack.c.h.b16 %v115
    %v285 = vunpack.c.l.b16 %v116
    %v286 = vunpack.c.h.b16 %v116
    %v287 = vunpack.c.l.b16 %v117
    %v288 = vunpack.c.h.b16 %v117
    %v289 = vunpack.c.l.b16 %v118
    %v290 = vunpack.c.h.b16 %v118
    %v291 = vunpack.c.l.b16 %v119
    %v292 = vunpack.c.h.b16 %v119
    %v293 = vunpack.c.l.b16 %v120
    %v294 = vunpack.c.h.b16 %v120
    %v295 = vunpack.c.l.b16 %v121
    %v296 = vunpack.c.h.b16 %v121
    %v297 = vunpack.c.l.b16 %v122
    %v298 = vunpack.c.h.b16 %v122
    %v299 = vunpack.c.l.b16 %v123
    %v300 = vunpack.c.h.b16 %v123
    %v301 = vunpack.c.l.b16 %v124
    %v302 = vunpack.c.h.b16 %v124
    %v303 = vunpack.c.l.b16 %v125
    %v304 = vunpack.c.h.b16 %v125
    %v305 = vunpack.c.l.b16 %v126
    %v306 = vunpack.c.h.b16 %v126
    %v307 = vunpack.c.l.b16 %v127
    %v308 = vunpack.c.h.b16 %v127
    %v309 = vunpack.c.l.b16 %v128
    %v310 = vunpack.c.h.b16 %v128
    %v311 = vunpack.c.l.b16 %v129
    %v312 = vunpack.c.h.b16 %v129
    %v313 = vunpack.c.l.b16 %v130
    %v314 = vunpack.c.h.b16 %v130
    %v315 = vunpack.c.l.b16 %v131
    %v316 = vunpack.c.h.b16 %v131
    %v317 = vunpack.c.l.b16 %v132
    %v318 = vunpack.c.h.b16 %v132
    %v319 = vunpack.c.l.b16 %v133
    %v320 = vunpack.c.h.b16 %v133
    %v321 = vunpack.c.l.b16 %v134
    %v322 = vunpack.c.h.b16 %v134
    %v323 = vunpack.c.l.b16 %v135
    %v324 = vunpack.c.h.b16 %v135
    %v325 = vunpack.c.l.b16 %v136
    %v326 = vunpack.c.h.b16 %v136
    %v327 = vunpack.c.l.b16 %v137
    %v328 = vunpack.c.h.b16 %v137
    %v329 = vunpack.c.l.b16 %v138
    %v330 = vunpack.c.h.b16 %v138
    %v331 = vunpack.c.l.b16 %v139
    %v332 = vunpack.c.h.b16 %v139
    %v333 = vunpack.c.l.b16 %v140
    %v334 = vunpack.c.h.b16 %v140
    %v335 = vunpack.c.l.b16 %v141
    %v336 = vunpack.c.h.b16 %v141
    %v337 = vunpack.c.l.b16 %v142
    %v338 = vunpack.c.h.b16 %v142
    %v339 = vunpack.c.l.b16 %v143
    %v340 = vunpack.c.h.b16 %v143
    %v341 = vunpack.c.l.b16 %v144
    %v342 = vunpack.c.h.b16 %v144
    %v343 = vunpack.c.l.b16 %v145
    %v344 = vunpack.c.h.b16 %v145
    %v345 = vunpack.c.l.b16 %v146
    %v346 = vunpack.c.h.b16 %v146
    %v347 = vunpack.c.l.b16 %v147
    %v348 = vunpack.c.h.b16 %v147
    %v349 = vunpack.c.l.b16 %v148
    %v350 = vunpack.c.h.b16 %v148
    %v351 = vpack.c.b16 %v227, %v223
    %v352 = vpack.c.b16 %v228, %v224
    %v353 = vpack.c.b16 %v229, %v225
    %v354 = vpack.c.b16 %v230, %v226
    %v355 = vpack.c.b16 %v235, %v231
    %v356 = vpack.c.b16 %v236, %v232
    %v357 = vpack.c.b16 %v237, %v233
    %v358 = vpack.c.b16 %v238, %v234
    %v359 = vpack.c.b16 %v243, %v239
    %v360 = vpack.c.b16 %v244, %v240
    %v361 = vpack.c.b16 %v245, %v241
    %v362 = vpack.c.b16 %v246, %v242
    %v363 = vpack.c.b16 %v251, %v247
    %v364 = vpack.c.b16 %v252, %v248
    %v365 = vpack.c.b16 %v253, %v249
    %v366 = vpack.c.b16 %v254, %v250
    %v367 = vpack.c.b16 %v259, %v255
    %v368 = vpack.c.b16 %v260, %v256
    %v369 = vpack.c.b16 %v261, %v257
    %v370 = vpack.c.b16 %v262, %v258
    %v371 = vpack.c.b16 %v267, %v263
    %v372 = vpack.c.b16 %v268, %v264
    %v373 = vpack.c.b16 %v269, %v265
    %v374 = vpack.c.b16 %v270, %v266
    %v375 = vpack.c.b16 %v275, %v271
    %v376 = vpack.c.b16 %v276, %v272
    %v377 = vpack.c.b16 %v277, %v273
    %v378 = vpack.c.b16 %v278, %v274
    %v379 = vpack.c.b16 %v283, %v279
    %v380 = vpack.c.b16 %v284, %v280
    %v381 = vpack.c.b16 %v285, %v281
    %v382 = vpack.c.b16 %v286, %v282
    %v383 = vpack.c.b16 %v291, %v287
    %v384 = vpack.c.b16 %v292, %v288
    %v385 = vpack.c.b16 %v293, %v289
    %v386 = vpack.c.b16 %v294, %v290
    %v387 = vpack.c.b16 %v299, %v295
    %v388 = vpack.c.b16 %v300, %v296
    %v389 = vpack.c.b16 %v301, %v297
    %v390 = vpack.c.b16 %v302, %v298
    %v391 = vpack.c.b16 %v307, %v303
    %v392 = vpack.c.b16 %v308, %v304
    %v393 = vpack.c.b16 %v309, %v305
    %v394 = vpack.c.b16 %v310, %v306
    %v395 = vpack.c.b16 %v315, %v311
    %v396 = vpack.c.b16 %v316, %v312
    %v397 = vpack.c.b16 %v317, %v313
    %v398 = vpack.c.b16 %v318, %v314
    %v399 = vpack.c.b16 %v323, %v319
    %v400 = vpack.c.b16 %v324, %v320
    %v401 = vpack.c.b16 %v325, %v321
    %v402 = vpack.c.b16 %v326, %v322
    %v403 = vpack.c.b16 %v331, %v327
    %v404 = vpack.c.b16 %v332, %v328
    %v405 = vpack.c.b16 %v333, %v329
    %v406 = vpack.c.b16 %v334, %v330
    %v407 = vpack.c.b16 %v339, %v335
    %v408 = vpack.c.b16 %v340, %v336
    %v409 = vpack.c.b16 %v341, %v337
    %v410 = vpack.c.b16 %v342, %v338
    %v411 = vpack.c.b16 %v347, %v343
    %v412 = vpack.c.b16 %v348, %v344
    %v413 = vpack.c.b16 %v349, %v345
    %v414 = vpack.c.b16 %v350, %v346
    %479 = vmatprep.subr.bf16.mxu0 %v352
    %480 = vmatpush1.bf16.msra.mxu0 %v351
    %481 = vmatprep.subr.bf16.mxu0 %v356
    %482 = vmatpush1.bf16.msra.mxu0 %v355
    %483 = vmatprep.subr.bf16.mxu0 %v360
    %484 = vmatpush1.bf16.msra.mxu0 %v359
    %485 = vmatprep.subr.bf16.mxu0 %v364
    %486 = vmatpush1.bf16.msra.mxu0 %v363
    %487 = vmatprep.subr.bf16.mxu0 %v368
    %488 = vmatpush1.bf16.msra.mxu0 %v367
    %489 = vmatprep.subr.bf16.mxu0 %v372
    %490 = vmatpush1.bf16.msra.mxu0 %v371
    %491 = vmatprep.subr.bf16.mxu0 %v376
    %492 = vmatpush1.bf16.msra.mxu0 %v375
    %493 = vmatprep.subr.bf16.mxu0 %v380
    %494 = vmatpush1.bf16.msra.mxu0 %v379
    %495 = vmatprep.subr.bf16.mxu0 %v384
    %496 = vmatpush1.bf16.msra.mxu0 %v383
    %497 = vmatprep.subr.bf16.mxu0 %v388
    %498 = vmatpush1.bf16.msra.mxu0 %v387
    %499 = vmatprep.subr.bf16.mxu0 %v392
    %500 = vmatpush1.bf16.msra.mxu0 %v391
    %501 = vmatprep.subr.bf16.mxu0 %v396
    %502 = vmatpush1.bf16.msra.mxu0 %v395
    %503 = vmatprep.subr.bf16.mxu0 %v400
    %504 = vmatpush1.bf16.msra.mxu0 %v399
    %505 = vmatprep.subr.bf16.mxu0 %v404
    %506 = vmatpush1.bf16.msra.mxu0 %v403
    %507 = vmatprep.subr.bf16.mxu0 %v408
    %508 = vmatpush1.bf16.msra.mxu0 %v407
    %509 = vmatprep.subr.bf16.mxu0 %v412
    %510 = vmatpush1.bf16.msra.mxu0 %v411
    %511 = vmatprep.mubr.bf16.mxu0 %v156
    %512 = vmatmul.mubr.bf16.gmra.mrb[0].mxu0 %v155
    %v513 = vpop.f32.mrb[0].mxu0
    %v514 = vadd.f32 0.0, %v513
    %v515 = vpop.f32.mrb[0].mxu0
    %v516 = vadd.f32 0.0, %v515
    %v517 = vpop.f32.mrb[0].mxu0
    %v518 = vadd.f32 0.0, %v517
    %v519 = vpop.f32.mrb[0].mxu0
    %v520 = vadd.f32 0.0, %v519
    %521 = vdwg.mxu0
    %522 = vmatprep.subr.bf16.mxu0 %v354
    %523 = vmatpush1.bf16.msra.mxu0 %v353
    %524 = vmatprep.subr.bf16.mxu0 %v358
    %525 = vmatpush1.bf16.msra.mxu0 %v357
    %526 = vmatprep.subr.bf16.mxu0 %v362
    %527 = vmatpush1.bf16.msra.mxu0 %v361
    %528 = vmatprep.subr.bf16.mxu0 %v366
    %529 = vmatpush1.bf16.msra.mxu0 %v365
    %530 = vmatprep.subr.bf16.mxu0 %v370
    %531 = vmatpush1.bf16.msra.mxu0 %v369
    %532 = vmatprep.subr.bf16.mxu0 %v374
    %533 = vmatpush1.bf16.msra.mxu0 %v373
    %534 = vmatprep.subr.bf16.mxu0 %v378
    %535 = vmatpush1.bf16.msra.mxu0 %v377
    %536 = vmatprep.subr.bf16.mxu0 %v382
    %537 = vmatpush1.bf16.msra.mxu0 %v381
    %538 = vmatprep.subr.bf16.mxu0 %v386
    %539 = vmatpush1.bf16.msra.mxu0 %v385
    %540 = vmatprep.subr.bf16.mxu0 %v390
    %541 = vmatpush1.bf16.msra.mxu0 %v389
    %542 = vmatprep.subr.bf16.mxu0 %v394
    %543 = vmatpush1.bf16.msra.mxu0 %v393
    %544 = vmatprep.subr.bf16.mxu0 %v398
    %545 = vmatpush1.bf16.msra.mxu0 %v397
    %546 = vmatprep.subr.bf16.mxu0 %v402
    %547 = vmatpush1.bf16.msra.mxu0 %v401
    %548 = vmatprep.subr.bf16.mxu0 %v406
    %549 = vmatpush1.bf16.msra.mxu0 %v405
    %550 = vmatprep.subr.bf16.mxu0 %v410
    %551 = vmatpush1.bf16.msra.mxu0 %v409
    %552 = vmatprep.subr.bf16.mxu0 %v414
    %553 = vmatpush1.bf16.msra.mxu0 %v413
    %554 = vmatprep.mubr.bf16.mxu0 %v156
    %555 = vmatmul.mubr.bf16.gmra.mrb[0].mxu0 %v155
    %v556 = vpop.f32.mrb[0].mxu0
    %v557 = vadd.f32 0.0, %v556
    %v558 = vpop.f32.mrb[0].mxu0
    %v559 = vadd.f32 0.0, %v558
    %v560 = vpop.f32.mrb[0].mxu0
    %v561 = vadd.f32 0.0, %v560
    %v562 = vpop.f32.mrb[0].mxu0
    %v563 = vadd.f32 0.0, %v562
    %564 = vdwg.mxu0
    %v565 = vpack.c.bf16 %v518, %v514
    %v566 = vpack.c.bf16 %v520, %v516
    %v567 = vpack.c.bf16 %v561, %v557
    %v568 = vpack.c.bf16 %v563, %v559
    %v569 = vld [vmem:[%s2] sm:$0xf]
    %v572 = vunpack.c.l.s4 1966171168
    %v573 = vunpack.c.0.s8 %v572
    %v574 = vlaneseq
    %v575 = vshrl.u32 %v574, 7
    %v576 = vsub.s32 %v573, %v575
    %v577 = vrot.slane %v569, %v576
    %v578 = vcombine.high %v577, %v577
    %v580 = vunpack.c.l.s4 1966171168
    %v581 = vunpack.c.0.s8 %v580
    %v582 = vlaneseq
    %v583 = vshrl.u32 %v582, 7
    %v584 = vsub.s32 %v581, %v583
    %v585 = vrot.slane %v577, %v584
    %v587 = vunpack.c.l.s4 1966171168
    %v588 = vunpack.c.0.s8 %v587
    %v589 = vlaneseq
    %v590 = vshrl.u32 %v589, 7
    %v591 = vsub.s32 %v588, %v590
    %v592 = vrot.slane %v578, %v591
    %v593 = vcombine.high %v585, %v585
    %v594 = vcombine.high %v592, %v592
    %v596 = vpack.i.b16 %v585, %v585
    %v598 = vlaneseq
    %v599 = vshrl.u32 %v598, 7
    %v600 = vsub.s32 0, %v599
    %v601 = vrot.slane %v596, %v600
    %v603 = vpack.i.b16 %v592, %v592
    %v605 = vlaneseq
    %v606 = vshrl.u32 %v605, 7
    %v607 = vsub.s32 0, %v606
    %v608 = vrot.slane %v603, %v607
    %v610 = vpack.i.b16 %v593, %v593
    %v612 = vlaneseq
    %v613 = vshrl.u32 %v612, 7
    %v614 = vsub.s32 0, %v613
    %v615 = vrot.slane %v610, %v614
    %v617 = vpack.i.b16 %v594, %v594
    %v619 = vlaneseq
    %v620 = vshrl.u32 %v619, 7
    %v621 = vsub.s32 0, %v620
    %v622 = vrot.slane %v617, %v621
    %v623 = vadd.bf16 %v565, %v601
    %v624 = vadd.bf16 %v566, %v608
    %v625 = vadd.bf16 %v567, %v615
    %v626 = vadd.bf16 %v568, %v622
    %v627 = vmax.bf16 %v623, 0
    %v628 = vmax.bf16 %v624, 0
    %v629 = vmax.bf16 %v625, 0
    %v630 = vmax.bf16 %v626, 0
    %v631 = vld [vmem:[#allocation7] sm:$0xff]
    %v632 = vld [vmem:[#allocation7 + $0x8] sm:$0xff]
    %v633 = vld [vmem:[#allocation7 + $0x10] sm:$0xff]
    %v634 = vld [vmem:[#allocation7 + $0x18] sm:$0xff]
    %v635 = vld [vmem:[#allocation7 + $0x20] sm:$0xff]
    %v636 = vld [vmem:[#allocation7 + $0x28] sm:$0xff]
    %v637 = vld [vmem:[#allocation7 + $0x30] sm:$0xff]
    %v638 = vld [vmem:[#allocation7 + $0x38] sm:$0xff]
    %v639 = vld [vmem:[#allocation7 + $0x40] sm:$0xff]
    %v640 = vld [vmem:[#allocation7 + $0x48] sm:$0xff]
    %v641 = vld [vmem:[#allocation7 + $0x50] sm:$0xff]
    %v642 = vld [vmem:[#allocation7 + $0x58] sm:$0xff]
    %v643 = vld [vmem:[#allocation7 + $0x60] sm:$0xff]
    %v644 = vld [vmem:[#allocation7 + $0x68] sm:$0xff]
    %v645 = vld [vmem:[#allocation7 + $0x70] sm:$0xff]
    %v646 = vld [vmem:[#allocation7 + $0x78] sm:$0xff]
    %v647 = vld [vmem:[#allocation7 + $0x80] sm:$0xff]
    %v648 = vld [vmem:[#allocation7 + $0x88] sm:$0xff]
    %v649 = vld [vmem:[#allocation7 + $0x90] sm:$0xff]
    %v650 = vld [vmem:[#allocation7 + $0x98] sm:$0xff]
    %v651 = vld [vmem:[#allocation7 + $0xa0] sm:$0xff]
    %v652 = vld [vmem:[#allocation7 + $0xa8] sm:$0xff]
    %v653 = vld [vmem:[#allocation7 + $0xb0] sm:$0xff]
    %v654 = vld [vmem:[#allocation7 + $0xb8] sm:$0xff]
    %v655 = vld [vmem:[#allocation7 + $0xc0] sm:$0xff]
    %v656 = vld [vmem:[#allocation7 + $0xc8] sm:$0xff]
    %v657 = vld [vmem:[#allocation7 + $0xd0] sm:$0xff]
    %v658 = vld [vmem:[#allocation7 + $0xd8] sm:$0xff]
    %v659 = vld [vmem:[#allocation7 + $0xe0] sm:$0xff]
    %v660 = vld [vmem:[#allocation7 + $0xe8] sm:$0xff]
    %v661 = vld [vmem:[#allocation7 + $0xf0] sm:$0xff]
    %v662 = vld [vmem:[#allocation7 + $0xf8] sm:$0xff]
    %v663 = vld [vmem:[#allocation7 + $0x100] sm:$0xff]
    %v664 = vld [vmem:[#allocation7 + $0x108] sm:$0xff]
    %v665 = vld [vmem:[#allocation7 + $0x110] sm:$0xff]
    %v666 = vld [vmem:[#allocation7 + $0x118] sm:$0xff]
    %v667 = vld [vmem:[#allocation7 + $0x120] sm:$0xff]
    %v668 = vld [vmem:[#allocation7 + $0x128] sm:$0xff]
    %v669 = vld [vmem:[#allocation7 + $0x130] sm:$0xff]
    %v670 = vld [vmem:[#allocation7 + $0x138] sm:$0xff]
    %v671 = vld [vmem:[#allocation7 + $0x140] sm:$0xff]
    %v672 = vld [vmem:[#allocation7 + $0x148] sm:$0xff]
    %v673 = vld [vmem:[#allocation7 + $0x150] sm:$0xff]
    %v674 = vld [vmem:[#allocation7 + $0x158] sm:$0xff]
    %v675 = vld [vmem:[#allocation7 + $0x160] sm:$0xff]
    %v676 = vld [vmem:[#allocation7 + $0x168] sm:$0xff]
    %v677 = vld [vmem:[#allocation7 + $0x170] sm:$0xff]
    %v678 = vld [vmem:[#allocation7 + $0x178] sm:$0xff]
    %v679 = vld [vmem:[#allocation7 + $0x180] sm:$0xff]
    %v680 = vld [vmem:[#allocation7 + $0x188] sm:$0xff]
    %v681 = vld [vmem:[#allocation7 + $0x190] sm:$0xff]
    %v682 = vld [vmem:[#allocation7 + $0x198] sm:$0xff]
    %v683 = vld [vmem:[#allocation7 + $0x1a0] sm:$0xff]
    %v684 = vld [vmem:[#allocation7 + $0x1a8] sm:$0xff]
    %v685 = vld [vmem:[#allocation7 + $0x1b0] sm:$0xff]
    %v686 = vld [vmem:[#allocation7 + $0x1b8] sm:$0xff]
    %v687 = vld [vmem:[#allocation7 + $0x1c0] sm:$0xff]
    %v688 = vld [vmem:[#allocation7 + $0x1c8] sm:$0xff]
    %v689 = vld [vmem:[#allocation7 + $0x1d0] sm:$0xff]
    %v690 = vld [vmem:[#allocation7 + $0x1d8] sm:$0xff]
    %v691 = vld [vmem:[#allocation7 + $0x1e0] sm:$0xff]
    %v692 = vld [vmem:[#allocation7 + $0x1e8] sm:$0xff]
    %v693 = vld [vmem:[#allocation7 + $0x1f0] sm:$0xff]
    %v694 = vld [vmem:[#allocation7 + $0x1f8] sm:$0xff]
    %v695 = vld [vmem:[#allocation7 + $0x200] sm:$0xff]
    %v696 = vld [vmem:[#allocation7 + $0x208] sm:$0xff]
    %v697 = vld [vmem:[#allocation7 + $0x210] sm:$0xff]
    %v698 = vld [vmem:[#allocation7 + $0x218] sm:$0xff]
    %v699 = vld [vmem:[#allocation7 + $0x220] sm:$0xff]
    %v700 = vld [vmem:[#allocation7 + $0x228] sm:$0xff]
    %v701 = vld [vmem:[#allocation7 + $0x230] sm:$0xff]
    %v702 = vld [vmem:[#allocation7 + $0x238] sm:$0xff]
    %v703 = vld [vmem:[#allocation7 + $0x240] sm:$0xff]
    %v704 = vld [vmem:[#allocation7 + $0x248] sm:$0xff]
    %v705 = vld [vmem:[#allocation7 + $0x250] sm:$0xff]
    %v706 = vld [vmem:[#allocation7 + $0x258] sm:$0xff]
    %v707 = vld [vmem:[#allocation7 + $0x260] sm:$0xff]
    %v708 = vld [vmem:[#allocation7 + $0x268] sm:$0xff]
    %v709 = vld [vmem:[#allocation7 + $0x270] sm:$0xff]
    %v710 = vld [vmem:[#allocation7 + $0x278] sm:$0xff]
    %v711 = vld [vmem:[#allocation7 + $0x280] sm:$0xff]
    %v712 = vld [vmem:[#allocation7 + $0x288] sm:$0xff]
    %v713 = vld [vmem:[#allocation7 + $0x290] sm:$0xff]
    %v714 = vld [vmem:[#allocation7 + $0x298] sm:$0xff]
    %v715 = vld [vmem:[#allocation7 + $0x2a0] sm:$0xff]
    %v716 = vld [vmem:[#allocation7 + $0x2a8] sm:$0xff]
    %v717 = vld [vmem:[#allocation7 + $0x2b0] sm:$0xff]
    %v718 = vld [vmem:[#allocation7 + $0x2b8] sm:$0xff]
    %v719 = vld [vmem:[#allocation7 + $0x2c0] sm:$0xff]
    %v720 = vld [vmem:[#allocation7 + $0x2c8] sm:$0xff]
    %v721 = vld [vmem:[#allocation7 + $0x2d0] sm:$0xff]
    %v722 = vld [vmem:[#allocation7 + $0x2d8] sm:$0xff]
    %v723 = vld [vmem:[#allocation7 + $0x2e0] sm:$0xff]
    %v724 = vld [vmem:[#allocation7 + $0x2e8] sm:$0xff]
    %v725 = vld [vmem:[#allocation7 + $0x2f0] sm:$0xff]
    %v726 = vld [vmem:[#allocation7 + $0x2f8] sm:$0xff]
    %v727 = vld [vmem:[#allocation7 + $0x300] sm:$0xff]
    %v728 = vld [vmem:[#allocation7 + $0x308] sm:$0xff]
    %v729 = vld [vmem:[#allocation7 + $0x310] sm:$0xff]
    %v730 = vld [vmem:[#allocation7 + $0x318] sm:$0xff]
    %v731 = vld [vmem:[#allocation7 + $0x320] sm:$0xff]
    %v732 = vld [vmem:[#allocation7 + $0x328] sm:$0xff]
    %v733 = vld [vmem:[#allocation7 + $0x330] sm:$0xff]
    %v734 = vld [vmem:[#allocation7 + $0x338] sm:$0xff]
    %v735 = vld [vmem:[#allocation7 + $0x340] sm:$0xff]
    %v736 = vld [vmem:[#allocation7 + $0x348] sm:$0xff]
    %v737 = vld [vmem:[#allocation7 + $0x350] sm:$0xff]
    %v738 = vld [vmem:[#allocation7 + $0x358] sm:$0xff]
    %v739 = vld [vmem:[#allocation7 + $0x360] sm:$0xff]
    %v740 = vld [vmem:[#allocation7 + $0x368] sm:$0xff]
    %v741 = vld [vmem:[#allocation7 + $0x370] sm:$0xff]
    %v742 = vld [vmem:[#allocation7 + $0x378] sm:$0xff]
    %v743 = vld [vmem:[#allocation7 + $0x380] sm:$0xff]
    %v744 = vld [vmem:[#allocation7 + $0x388] sm:$0xff]
    %v745 = vld [vmem:[#allocation7 + $0x390] sm:$0xff]
    %v746 = vld [vmem:[#allocation7 + $0x398] sm:$0xff]
    %v747 = vld [vmem:[#allocation7 + $0x3a0] sm:$0xff]
    %v748 = vld [vmem:[#allocation7 + $0x3a8] sm:$0xff]
    %v749 = vld [vmem:[#allocation7 + $0x3b0] sm:$0xff]
    %v750 = vld [vmem:[#allocation7 + $0x3b8] sm:$0xff]
    %v751 = vld [vmem:[#allocation7 + $0x3c0] sm:$0xff]
    %v752 = vld [vmem:[#allocation7 + $0x3c8] sm:$0xff]
    %v753 = vld [vmem:[#allocation7 + $0x3d0] sm:$0xff]
    %v754 = vld [vmem:[#allocation7 + $0x3d8] sm:$0xff]
    %v755 = vld [vmem:[#allocation7 + $0x3e0] sm:$0xff]
    %v756 = vld [vmem:[#allocation7 + $0x3e8] sm:$0xff]
    %v757 = vld [vmem:[#allocation7 + $0x3f0] sm:$0xff]
    %v758 = vld [vmem:[#allocation7 + $0x3f8] sm:$0xff]
    %v887 = vunpack.c.l.b16 %v631
    %v888 = vunpack.c.h.b16 %v631
    %v889 = vunpack.c.l.b16 %v632
    %v890 = vunpack.c.h.b16 %v632
    %v891 = vunpack.c.l.b16 %v633
    %v892 = vunpack.c.h.b16 %v633
    %v893 = vunpack.c.l.b16 %v634
    %v894 = vunpack.c.h.b16 %v634
    %v895 = vunpack.c.l.b16 %v635
    %v896 = vunpack.c.h.b16 %v635
    %v897 = vunpack.c.l.b16 %v636
    %v898 = vunpack.c.h.b16 %v636
    %v899 = vunpack.c.l.b16 %v637
    %v900 = vunpack.c.h.b16 %v637
    %v901 = vunpack.c.l.b16 %v638
    %v902 = vunpack.c.h.b16 %v638
    %v903 = vunpack.c.l.b16 %v639
    %v904 = vunpack.c.h.b16 %v639
    %v905 = vunpack.c.l.b16 %v640
    %v906 = vunpack.c.h.b16 %v640
    %v907 = vunpack.c.l.b16 %v641
    %v908 = vunpack.c.h.b16 %v641
    %v909 = vunpack.c.l.b16 %v642
    %v910 = vunpack.c.h.b16 %v642
    %v911 = vunpack.c.l.b16 %v643
    %v912 = vunpack.c.h.b16 %v643
    %v913 = vunpack.c.l.b16 %v644
    %v914 = vunpack.c.h.b16 %v644
    %v915 = vunpack.c.l.b16 %v645
    %v916 = vunpack.c.h.b16 %v645
    %v917 = vunpack.c.l.b16 %v646
    %v918 = vunpack.c.h.b16 %v646
    %v919 = vunpack.c.l.b16 %v647
    %v920 = vunpack.c.h.b16 %v647
    %v921 = vunpack.c.l.b16 %v648
    %v922 = vunpack.c.h.b16 %v648
    %v923 = vunpack.c.l.b16 %v649
    %v924 = vunpack.c.h.b16 %v649
    %v925 = vunpack.c.l.b16 %v650
    %v926 = vunpack.c.h.b16 %v650
    %v927 = vunpack.c.l.b16 %v651
    %v928 = vunpack.c.h.b16 %v651
    %v929 = vunpack.c.l.b16 %v652
    %v930 = vunpack.c.h.b16 %v652
    %v931 = vunpack.c.l.b16 %v653
    %v932 = vunpack.c.h.b16 %v653
    %v933 = vunpack.c.l.b16 %v654
    %v934 = vunpack.c.h.b16 %v654
    %v935 = vunpack.c.l.b16 %v655
    %v936 = vunpack.c.h.b16 %v655
    %v937 = vunpack.c.l.b16 %v656
    %v938 = vunpack.c.h.b16 %v656
    %v939 = vunpack.c.l.b16 %v657
    %v940 = vunpack.c.h.b16 %v657
    %v941 = vunpack.c.l.b16 %v658
    %v942 = vunpack.c.h.b16 %v658
    %v943 = vunpack.c.l.b16 %v659
    %v944 = vunpack.c.h.b16 %v659
    %v945 = vunpack.c.l.b16 %v660
    %v946 = vunpack.c.h.b16 %v660
    %v947 = vunpack.c.l.b16 %v661
    %v948 = vunpack.c.h.b16 %v661
    %v949 = vunpack.c.l.b16 %v662
    %v950 = vunpack.c.h.b16 %v662
    %v951 = vunpack.c.l.b16 %v663
    %v952 = vunpack.c.h.b16 %v663
    %v953 = vunpack.c.l.b16 %v664
    %v954 = vunpack.c.h.b16 %v664
    %v955 = vunpack.c.l.b16 %v665
    %v956 = vunpack.c.h.b16 %v665
    %v957 = vunpack.c.l.b16 %v666
    %v958 = vunpack.c.h.b16 %v666
    %v959 = vunpack.c.l.b16 %v667
    %v960 = vunpack.c.h.b16 %v667
    %v961 = vunpack.c.l.b16 %v668
    %v962 = vunpack.c.h.b16 %v668
    %v963 = vunpack.c.l.b16 %v669
    %v964 = vunpack.c.h.b16 %v669
    %v965 = vunpack.c.l.b16 %v670
    %v966 = vunpack.c.h.b16 %v670
    %v967 = vunpack.c.l.b16 %v671
    %v968 = vunpack.c.h.b16 %v671
    %v969 = vunpack.c.l.b16 %v672
    %v970 = vunpack.c.h.b16 %v672
    %v971 = vunpack.c.l.b16 %v673
    %v972 = vunpack.c.h.b16 %v673
    %v973 = vunpack.c.l.b16 %v674
    %v974 = vunpack.c.h.b16 %v674
    %v975 = vunpack.c.l.b16 %v675
    %v976 = vunpack.c.h.b16 %v675
    %v977 = vunpack.c.l.b16 %v676
    %v978 = vunpack.c.h.b16 %v676
    %v979 = vunpack.c.l.b16 %v677
    %v980 = vunpack.c.h.b16 %v677
    %v981 = vunpack.c.l.b16 %v678
    %v982 = vunpack.c.h.b16 %v678
    %v983 = vunpack.c.l.b16 %v679
    %v984 = vunpack.c.h.b16 %v679
    %v985 = vunpack.c.l.b16 %v680
    %v986 = vunpack.c.h.b16 %v680
    %v987 = vunpack.c.l.b16 %v681
    %v988 = vunpack.c.h.b16 %v681
    %v989 = vunpack.c.l.b16 %v682
    %v990 = vunpack.c.h.b16 %v682
    %v991 = vunpack.c.l.b16 %v683
    %v992 = vunpack.c.h.b16 %v683
    %v993 = vunpack.c.l.b16 %v684
    %v994 = vunpack.c.h.b16 %v684
    %v995 = vunpack.c.l.b16 %v685
    %v996 = vunpack.c.h.b16 %v685
    %v997 = vunpack.c.l.b16 %v686
    %v998 = vunpack.c.h.b16 %v686
    %v999 = vunpack.c.l.b16 %v687
    %v1000 = vunpack.c.h.b16 %v687
    %v1001 = vunpack.c.l.b16 %v688
    %v1002 = vunpack.c.h.b16 %v688
    %v1003 = vunpack.c.l.b16 %v689
    %v1004 = vunpack.c.h.b16 %v689
    %v1005 = vunpack.c.l.b16 %v690
    %v1006 = vunpack.c.h.b16 %v690
    %v1007 = vunpack.c.l.b16 %v691
    %v1008 = vunpack.c.h.b16 %v691
    %v1009 = vunpack.c.l.b16 %v692
    %v1010 = vunpack.c.h.b16 %v692
    %v1011 = vunpack.c.l.b16 %v693
    %v1012 = vunpack.c.h.b16 %v693
    %v1013 = vunpack.c.l.b16 %v694
    %v1014 = vunpack.c.h.b16 %v694
    %v1015 = vunpack.c.l.b16 %v695
    %v1016 = vunpack.c.h.b16 %v695
    %v1017 = vunpack.c.l.b16 %v696
    %v1018 = vunpack.c.h.b16 %v696
    %v1019 = vunpack.c.l.b16 %v697
    %v1020 = vunpack.c.h.b16 %v697
    %v1021 = vunpack.c.l.b16 %v698
    %v1022 = vunpack.c.h.b16 %v698
    %v1023 = vunpack.c.l.b16 %v699
    %v1024 = vunpack.c.h.b16 %v699
    %v1025 = vunpack.c.l.b16 %v700
    %v1026 = vunpack.c.h.b16 %v700
    %v1027 = vunpack.c.l.b16 %v701
    %v1028 = vunpack.c.h.b16 %v701
    %v1029 = vunpack.c.l.b16 %v702
    %v1030 = vunpack.c.h.b16 %v702
    %v1031 = vunpack.c.l.b16 %v703
    %v1032 = vunpack.c.h.b16 %v703
    %v1033 = vunpack.c.l.b16 %v704
    %v1034 = vunpack.c.h.b16 %v704
    %v1035 = vunpack.c.l.b16 %v705
    %v1036 = vunpack.c.h.b16 %v705
    %v1037 = vunpack.c.l.b16 %v706
    %v1038 = vunpack.c.h.b16 %v706
    %v1039 = vunpack.c.l.b16 %v707
    %v1040 = vunpack.c.h.b16 %v707
    %v1041 = vunpack.c.l.b16 %v708
    %v1042 = vunpack.c.h.b16 %v708
    %v1043 = vunpack.c.l.b16 %v709
    %v1044 = vunpack.c.h.b16 %v709
    %v1045 = vunpack.c.l.b16 %v710
    %v1046 = vunpack.c.h.b16 %v710
    %v1047 = vunpack.c.l.b16 %v711
    %v1048 = vunpack.c.h.b16 %v711
    %v1049 = vunpack.c.l.b16 %v712
    %v1050 = vunpack.c.h.b16 %v712
    %v1051 = vunpack.c.l.b16 %v713
    %v1052 = vunpack.c.h.b16 %v713
    %v1053 = vunpack.c.l.b16 %v714
    %v1054 = vunpack.c.h.b16 %v714
    %v1055 = vunpack.c.l.b16 %v715
    %v1056 = vunpack.c.h.b16 %v715
    %v1057 = vunpack.c.l.b16 %v716
    %v1058 = vunpack.c.h.b16 %v716
    %v1059 = vunpack.c.l.b16 %v717
    %v1060 = vunpack.c.h.b16 %v717
    %v1061 = vunpack.c.l.b16 %v718
    %v1062 = vunpack.c.h.b16 %v718
    %v1063 = vunpack.c.l.b16 %v719
    %v1064 = vunpack.c.h.b16 %v719
    %v1065 = vunpack.c.l.b16 %v720
    %v1066 = vunpack.c.h.b16 %v720
    %v1067 = vunpack.c.l.b16 %v721
    %v1068 = vunpack.c.h.b16 %v721
    %v1069 = vunpack.c.l.b16 %v722
    %v1070 = vunpack.c.h.b16 %v722
    %v1071 = vunpack.c.l.b16 %v723
    %v1072 = vunpack.c.h.b16 %v723
    %v1073 = vunpack.c.l.b16 %v724
    %v1074 = vunpack.c.h.b16 %v724
    %v1075 = vunpack.c.l.b16 %v725
    %v1076 = vunpack.c.h.b16 %v725
    %v1077 = vunpack.c.l.b16 %v726
    %v1078 = vunpack.c.h.b16 %v726
    %v1079 = vunpack.c.l.b16 %v727
    %v1080 = vunpack.c.h.b16 %v727
    %v1081 = vunpack.c.l.b16 %v728
    %v1082 = vunpack.c.h.b16 %v728
    %v1083 = vunpack.c.l.b16 %v729
    %v1084 = vunpack.c.h.b16 %v729
    %v1085 = vunpack.c.l.b16 %v730
    %v1086 = vunpack.c.h.b16 %v730
    %v1087 = vunpack.c.l.b16 %v731
    %v1088 = vunpack.c.h.b16 %v731
    %v1089 = vunpack.c.l.b16 %v732
    %v1090 = vunpack.c.h.b16 %v732
    %v1091 = vunpack.c.l.b16 %v733
    %v1092 = vunpack.c.h.b16 %v733
    %v1093 = vunpack.c.l.b16 %v734
    %v1094 = vunpack.c.h.b16 %v734
    %v1095 = vunpack.c.l.b16 %v735
    %v1096 = vunpack.c.h.b16 %v735
    %v1097 = vunpack.c.l.b16 %v736
    %v1098 = vunpack.c.h.b16 %v736
    %v1099 = vunpack.c.l.b16 %v737
    %v1100 = vunpack.c.h.b16 %v737
    %v1101 = vunpack.c.l.b16 %v738
    %v1102 = vunpack.c.h.b16 %v738
    %v1103 = vunpack.c.l.b16 %v739
    %v1104 = vunpack.c.h.b16 %v739
    %v1105 = vunpack.c.l.b16 %v740
    %v1106 = vunpack.c.h.b16 %v740
    %v1107 = vunpack.c.l.b16 %v741
    %v1108 = vunpack.c.h.b16 %v741
    %v1109 = vunpack.c.l.b16 %v742
    %v1110 = vunpack.c.h.b16 %v742
    %v1111 = vunpack.c.l.b16 %v743
    %v1112 = vunpack.c.h.b16 %v743
    %v1113 = vunpack.c.l.b16 %v744
    %v1114 = vunpack.c.h.b16 %v744
    %v1115 = vunpack.c.l.b16 %v745
    %v1116 = vunpack.c.h.b16 %v745
    %v1117 = vunpack.c.l.b16 %v746
    %v1118 = vunpack.c.h.b16 %v746
    %v1119 = vunpack.c.l.b16 %v747
    %v1120 = vunpack.c.h.b16 %v747
    %v1121 = vunpack.c.l.b16 %v748
    %v1122 = vunpack.c.h.b16 %v748
    %v1123 = vunpack.c.l.b16 %v749
    %v1124 = vunpack.c.h.b16 %v749
    %v1125 = vunpack.c.l.b16 %v750
    %v1126 = vunpack.c.h.b16 %v750
    %v1127 = vunpack.c.l.b16 %v751
    %v1128 = vunpack.c.h.b16 %v751
    %v1129 = vunpack.c.l.b16 %v752
    %v1130 = vunpack.c.h.b16 %v752
    %v1131 = vunpack.c.l.b16 %v753
    %v1132 = vunpack.c.h.b16 %v753
    %v1133 = vunpack.c.l.b16 %v754
    %v1134 = vunpack.c.h.b16 %v754
    %v1135 = vunpack.c.l.b16 %v755
    %v1136 = vunpack.c.h.b16 %v755
    %v1137 = vunpack.c.l.b16 %v756
    %v1138 = vunpack.c.h.b16 %v756
    %v1139 = vunpack.c.l.b16 %v757
    %v1140 = vunpack.c.h.b16 %v757
    %v1141 = vunpack.c.l.b16 %v758
    %v1142 = vunpack.c.h.b16 %v758
    %v1143 = vpack.c.b16 %v891, %v887
    %v1144 = vpack.c.b16 %v892, %v888
    %v1145 = vpack.c.b16 %v893, %v889
    %v1146 = vpack.c.b16 %v894, %v890
    %v1147 = vpack.c.b16 %v899, %v895
    %v1148 = vpack.c.b16 %v900, %v896
    %v1149 = vpack.c.b16 %v901, %v897
    %v1150 = vpack.c.b16 %v902, %v898
    %v1151 = vpack.c.b16 %v907, %v903
    %v1152 = vpack.c.b16 %v908, %v904
    %v1153 = vpack.c.b16 %v909, %v905
    %v1154 = vpack.c.b16 %v910, %v906
    %v1155 = vpack.c.b16 %v915, %v911
    %v1156 = vpack.c.b16 %v916, %v912
    %v1157 = vpack.c.b16 %v917, %v913
    %v1158 = vpack.c.b16 %v918, %v914
    %v1159 = vpack.c.b16 %v923, %v919
    %v1160 = vpack.c.b16 %v924, %v920
    %v1161 = vpack.c.b16 %v925, %v921
    %v1162 = vpack.c.b16 %v926, %v922
    %v1163 = vpack.c.b16 %v931, %v927
    %v1164 = vpack.c.b16 %v932, %v928
    %v1165 = vpack.c.b16 %v933, %v929
    %v1166 = vpack.c.b16 %v934, %v930
    %v1167 = vpack.c.b16 %v939, %v935
    %v1168 = vpack.c.b16 %v940, %v936
    %v1169 = vpack.c.b16 %v941, %v937
    %v1170 = vpack.c.b16 %v942, %v938
    %v1171 = vpack.c.b16 %v947, %v943
    %v1172 = vpack.c.b16 %v948, %v944
    %v1173 = vpack.c.b16 %v949, %v945
    %v1174 = vpack.c.b16 %v950, %v946
    %v1175 = vpack.c.b16 %v955, %v951
    %v1176 = vpack.c.b16 %v956, %v952
    %v1177 = vpack.c.b16 %v957, %v953
    %v1178 = vpack.c.b16 %v958, %v954
    %v1179 = vpack.c.b16 %v963, %v959
    %v1180 = vpack.c.b16 %v964, %v960
    %v1181 = vpack.c.b16 %v965, %v961
    %v1182 = vpack.c.b16 %v966, %v962
    %v1183 = vpack.c.b16 %v971, %v967
    %v1184 = vpack.c.b16 %v972, %v968
    %v1185 = vpack.c.b16 %v973, %v969
    %v1186 = vpack.c.b16 %v974, %v970
    %v1187 = vpack.c.b16 %v979, %v975
    %v1188 = vpack.c.b16 %v980, %v976
    %v1189 = vpack.c.b16 %v981, %v977
    %v1190 = vpack.c.b16 %v982, %v978
    %v1191 = vpack.c.b16 %v987, %v983
    %v1192 = vpack.c.b16 %v988, %v984
    %v1193 = vpack.c.b16 %v989, %v985
    %v1194 = vpack.c.b16 %v990, %v986
    %v1195 = vpack.c.b16 %v995, %v991
    %v1196 = vpack.c.b16 %v996, %v992
    %v1197 = vpack.c.b16 %v997, %v993
    %v1198 = vpack.c.b16 %v998, %v994
    %v1199 = vpack.c.b16 %v1003, %v999
    %v1200 = vpack.c.b16 %v1004, %v1000
    %v1201 = vpack.c.b16 %v1005, %v1001
    %v1202 = vpack.c.b16 %v1006, %v1002
    %v1203 = vpack.c.b16 %v1011, %v1007
    %v1204 = vpack.c.b16 %v1012, %v1008
    %v1205 = vpack.c.b16 %v1013, %v1009
    %v1206 = vpack.c.b16 %v1014, %v1010
    %v1207 = vpack.c.b16 %v1019, %v1015
    %v1208 = vpack.c.b16 %v1020, %v1016
    %v1209 = vpack.c.b16 %v1021, %v1017
    %v1210 = vpack.c.b16 %v1022, %v1018
    %v1211 = vpack.c.b16 %v1027, %v1023
    %v1212 = vpack.c.b16 %v1028, %v1024
    %v1213 = vpack.c.b16 %v1029, %v1025
    %v1214 = vpack.c.b16 %v1030, %v1026
    %v1215 = vpack.c.b16 %v1035, %v1031
    %v1216 = vpack.c.b16 %v1036, %v1032
    %v1217 = vpack.c.b16 %v1037, %v1033
    %v1218 = vpack.c.b16 %v1038, %v1034
    %v1219 = vpack.c.b16 %v1043, %v1039
    %v1220 = vpack.c.b16 %v1044, %v1040
    %v1221 = vpack.c.b16 %v1045, %v1041
    %v1222 = vpack.c.b16 %v1046, %v1042
    %v1223 = vpack.c.b16 %v1051, %v1047
    %v1224 = vpack.c.b16 %v1052, %v1048
    %v1225 = vpack.c.b16 %v1053, %v1049
    %v1226 = vpack.c.b16 %v1054, %v1050
    %v1227 = vpack.c.b16 %v1059, %v1055
    %v1228 = vpack.c.b16 %v1060, %v1056
    %v1229 = vpack.c.b16 %v1061, %v1057
    %v1230 = vpack.c.b16 %v1062, %v1058
    %v1231 = vpack.c.b16 %v1067, %v1063
    %v1232 = vpack.c.b16 %v1068, %v1064
    %v1233 = vpack.c.b16 %v1069, %v1065
    %v1234 = vpack.c.b16 %v1070, %v1066
    %v1235 = vpack.c.b16 %v1075, %v1071
    %v1236 = vpack.c.b16 %v1076, %v1072
    %v1237 = vpack.c.b16 %v1077, %v1073
    %v1238 = vpack.c.b16 %v1078, %v1074
    %v1239 = vpack.c.b16 %v1083, %v1079
    %v1240 = vpack.c.b16 %v1084, %v1080
    %v1241 = vpack.c.b16 %v1085, %v1081
    %v1242 = vpack.c.b16 %v1086, %v1082
    %v1243 = vpack.c.b16 %v1091, %v1087
    %v1244 = vpack.c.b16 %v1092, %v1088
    %v1245 = vpack.c.b16 %v1093, %v1089
    %v1246 = vpack.c.b16 %v1094, %v1090
    %v1247 = vpack.c.b16 %v1099, %v1095
    %v1248 = vpack.c.b16 %v1100, %v1096
    %v1249 = vpack.c.b16 %v1101, %v1097
    %v1250 = vpack.c.b16 %v1102, %v1098
    %v1251 = vpack.c.b16 %v1107, %v1103
    %v1252 = vpack.c.b16 %v1108, %v1104
    %v1253 = vpack.c.b16 %v1109, %v1105
    %v1254 = vpack.c.b16 %v1110, %v1106
    %v1255 = vpack.c.b16 %v1115, %v1111
    %v1256 = vpack.c.b16 %v1116, %v1112
    %v1257 = vpack.c.b16 %v1117, %v1113
    %v1258 = vpack.c.b16 %v1118, %v1114
    %v1259 = vpack.c.b16 %v1123, %v1119
    %v1260 = vpack.c.b16 %v1124, %v1120
    %v1261 = vpack.c.b16 %v1125, %v1121
    %v1262 = vpack.c.b16 %v1126, %v1122
    %v1263 = vpack.c.b16 %v1131, %v1127
    %v1264 = vpack.c.b16 %v1132, %v1128
    %v1265 = vpack.c.b16 %v1133, %v1129
    %v1266 = vpack.c.b16 %v1134, %v1130
    %v1267 = vpack.c.b16 %v1139, %v1135
    %v1268 = vpack.c.b16 %v1140, %v1136
    %v1269 = vpack.c.b16 %v1141, %v1137
    %v1270 = vpack.c.b16 %v1142, %v1138
    %1399 = vmatprep.subr.bf16.mxu0 %v1144
    %1400 = vmatpush1.bf16.msra.mxu0 %v1143
    %1401 = vmatprep.subr.bf16.mxu0 %v1148
    %1402 = vmatpush1.bf16.msra.mxu0 %v1147
    %1403 = vmatprep.subr.bf16.mxu0 %v1152
    %1404 = vmatpush1.bf16.msra.mxu0 %v1151
    %1405 = vmatprep.subr.bf16.mxu0 %v1156
    %1406 = vmatpush1.bf16.msra.mxu0 %v1155
    %1407 = vmatprep.subr.bf16.mxu0 %v1160
    %1408 = vmatpush1.bf16.msra.mxu0 %v1159
    %1409 = vmatprep.subr.bf16.mxu0 %v1164
    %1410 = vmatpush1.bf16.msra.mxu0 %v1163
    %1411 = vmatprep.subr.bf16.mxu0 %v1168
    %1412 = vmatpush1.bf16.msra.mxu0 %v1167
    %1413 = vmatprep.subr.bf16.mxu0 %v1172
    %1414 = vmatpush1.bf16.msra.mxu0 %v1171
    %1415 = vmatprep.subr.bf16.mxu0 %v1176
    %1416 = vmatpush1.bf16.msra.mxu0 %v1175
    %1417 = vmatprep.subr.bf16.mxu0 %v1180
    %1418 = vmatpush1.bf16.msra.mxu0 %v1179
    %1419 = vmatprep.subr.bf16.mxu0 %v1184
    %1420 = vmatpush1.bf16.msra.mxu0 %v1183
    %1421 = vmatprep.subr.bf16.mxu0 %v1188
    %1422 = vmatpush1.bf16.msra.mxu0 %v1187
    %1423 = vmatprep.subr.bf16.mxu0 %v1192
    %1424 = vmatpush1.bf16.msra.mxu0 %v1191
    %1425 = vmatprep.subr.bf16.mxu0 %v1196
    %1426 = vmatpush1.bf16.msra.mxu0 %v1195
    %1427 = vmatprep.subr.bf16.mxu0 %v1200
    %1428 = vmatpush1.bf16.msra.mxu0 %v1199
    %1429 = vmatprep.subr.bf16.mxu0 %v1204
    %1430 = vmatpush1.bf16.msra.mxu0 %v1203
    %1431 = vmatprep.mubr.bf16.mxu0 %v628
    %1432 = vmatmul.mubr.bf16.gmra.mrb[0].mxu0 %v627
    %v1433 = vpop.f32.mrb[0].mxu0
    %v1434 = vadd.f32 0.0, %v1433
    %v1435 = vpop.f32.mrb[0].mxu0
    %v1436 = vadd.f32 0.0, %v1435
    %v1437 = vpop.f32.mrb[0].mxu0
    %v1438 = vadd.f32 0.0, %v1437
    %v1439 = vpop.f32.mrb[0].mxu0
    %v1440 = vadd.f32 0.0, %v1439
    %1441 = vdwg.mxu0
    %1442 = vmatprep.subr.bf16.mxu0 %v1208
    %1443 = vmatpush1.bf16.msra.mxu0 %v1207
    %1444 = vmatprep.subr.bf16.mxu0 %v1212
    %1445 = vmatpush1.bf16.msra.mxu0 %v1211
    %1446 = vmatprep.subr.bf16.mxu0 %v1216
    %1447 = vmatpush1.bf16.msra.mxu0 %v1215
    %1448 = vmatprep.subr.bf16.mxu0 %v1220
    %1449 = vmatpush1.bf16.msra.mxu0 %v1219
    %1450 = vmatprep.subr.bf16.mxu0 %v1224
    %1451 = vmatpush1.bf16.msra.mxu0 %v1223
    %1452 = vmatprep.subr.bf16.mxu0 %v1228
    %1453 = vmatpush1.bf16.msra.mxu0 %v1227
    %1454 = vmatprep.subr.bf16.mxu0 %v1232
    %1455 = vmatpush1.bf16.msra.mxu0 %v1231
    %1456 = vmatprep.subr.bf16.mxu0 %v1236
    %1457 = vmatpush1.bf16.msra.mxu0 %v1235
    %1458 = vmatprep.subr.bf16.mxu0 %v1240
    %1459 = vmatpush1.bf16.msra.mxu0 %v1239
    %1460 = vmatprep.subr.bf16.mxu0 %v1244
    %1461 = vmatpush1.bf16.msra.mxu0 %v1243
    %1462 = vmatprep.subr.bf16.mxu0 %v1248
    %1463 = vmatpush1.bf16.msra.mxu0 %v1247
    %1464 = vmatprep.subr.bf16.mxu0 %v1252
    %1465 = vmatpush1.bf16.msra.mxu0 %v1251
    %1466 = vmatprep.subr.bf16.mxu0 %v1256
    %1467 = vmatpush1.bf16.msra.mxu0 %v1255
    %1468 = vmatprep.subr.bf16.mxu0 %v1260
    %1469 = vmatpush1.bf16.msra.mxu0 %v1259
    %1470 = vmatprep.subr.bf16.mxu0 %v1264
    %1471 = vmatpush1.bf16.msra.mxu0 %v1263
    %1472 = vmatprep.subr.bf16.mxu0 %v1268
    %1473 = vmatpush1.bf16.msra.mxu0 %v1267
    %1474 = vmatprep.mubr.bf16.mxu0 %v630
    %1475 = vmatmul.mubr.bf16.gmra.mrb[0].mxu0 %v629
    %v1476 = vpop.f32.mrb[0].mxu0
    %v1477 = vadd.f32 %v1434, %v1476
    %v1478 = vpop.f32.mrb[0].mxu0
    %v1479 = vadd.f32 %v1436, %v1478
    %v1480 = vpop.f32.mrb[0].mxu0
    %v1481 = vadd.f32 %v1438, %v1480
    %v1482 = vpop.f32.mrb[0].mxu0
    %v1483 = vadd.f32 %v1440, %v1482
    %1484 = vdwg.mxu0
    %1485 = vmatprep.subr.bf16.mxu0 %v1146
    %1486 = vmatpush1.bf16.msra.mxu0 %v1145
    %1487 = vmatprep.subr.bf16.mxu0 %v1150
    %1488 = vmatpush1.bf16.msra.mxu0 %v1149
    %1489 = vmatprep.subr.bf16.mxu0 %v1154
    %1490 = vmatpush1.bf16.msra.mxu0 %v1153
    %1491 = vmatprep.subr.bf16.mxu0 %v1158
    %1492 = vmatpush1.bf16.msra.mxu0 %v1157
    %1493 = vmatprep.subr.bf16.mxu0 %v1162
    %1494 = vmatpush1.bf16.msra.mxu0 %v1161
    %1495 = vmatprep.subr.bf16.mxu0 %v1166
    %1496 = vmatpush1.bf16.msra.mxu0 %v1165
    %1497 = vmatprep.subr.bf16.mxu0 %v1170
    %1498 = vmatpush1.bf16.msra.mxu0 %v1169
    %1499 = vmatprep.subr.bf16.mxu0 %v1174
    %1500 = vmatpush1.bf16.msra.mxu0 %v1173
    %1501 = vmatprep.subr.bf16.mxu0 %v1178
    %1502 = vmatpush1.bf16.msra.mxu0 %v1177
    %1503 = vmatprep.subr.bf16.mxu0 %v1182
    %1504 = vmatpush1.bf16.msra.mxu0 %v1181
    %1505 = vmatprep.subr.bf16.mxu0 %v1186
    %1506 = vmatpush1.bf16.msra.mxu0 %v1185
    %1507 = vmatprep.subr.bf16.mxu0 %v1190
    %1508 = vmatpush1.bf16.msra.mxu0 %v1189
    %1509 = vmatprep.subr.bf16.mxu0 %v1194
    %1510 = vmatpush1.bf16.msra.mxu0 %v1193
    %1511 = vmatprep.subr.bf16.mxu0 %v1198
    %1512 = vmatpush1.bf16.msra.mxu0 %v1197
    %1513 = vmatprep.subr.bf16.mxu0 %v1202
    %1514 = vmatpush1.bf16.msra.mxu0 %v1201
    %1515 = vmatprep.subr.bf16.mxu0 %v1206
    %1516 = vmatpush1.bf16.msra.mxu0 %v1205
    %1517 = vmatprep.mubr.bf16.mxu0 %v628
    %1518 = vmatmul.mubr.bf16.gmra.mrb[0].mxu0 %v627
    %v1519 = vpop.f32.mrb[0].mxu0
    %v1520 = vadd.f32 0.0, %v1519
    %v1521 = vpop.f32.mrb[0].mxu0
    %v1522 = vadd.f32 0.0, %v1521
    %v1523 = vpop.f32.mrb[0].mxu0
    %v1524 = vadd.f32 0.0, %v1523
    %v1525 = vpop.f32.mrb[0].mxu0
    %v1526 = vadd.f32 0.0, %v1525
    %1527 = vdwg.mxu0
    %1528 = vmatprep.subr.bf16.mxu0 %v1210
    %1529 = vmatpush1.bf16.msra.mxu0 %v1209
    %1530 = vmatprep.subr.bf16.mxu0 %v1214
    %1531 = vmatpush1.bf16.msra.mxu0 %v1213
    %1532 = vmatprep.subr.bf16.mxu0 %v1218
    %1533 = vmatpush1.bf16.msra.mxu0 %v1217
    %1534 = vmatprep.subr.bf16.mxu0 %v1222
    %1535 = vmatpush1.bf16.msra.mxu0 %v1221
    %1536 = vmatprep.subr.bf16.mxu0 %v1226
    %1537 = vmatpush1.bf16.msra.mxu0 %v1225
    %1538 = vmatprep.subr.bf16.mxu0 %v1230
    %1539 = vmatpush1.bf16.msra.mxu0 %v1229
    %1540 = vmatprep.subr.bf16.mxu0 %v1234
    %1541 = vmatpush1.bf16.msra.mxu0 %v1233
    %1542 = vmatprep.subr.bf16.mxu0 %v1238
    %1543 = vmatpush1.bf16.msra.mxu0 %v1237
    %1544 = vmatprep.subr.bf16.mxu0 %v1242
    %1545 = vmatpush1.bf16.msra.mxu0 %v1241
    %1546 = vmatprep.subr.bf16.mxu0 %v1246
    %1547 = vmatpush1.bf16.msra.mxu0 %v1245
    %1548 = vmatprep.subr.bf16.mxu0 %v1250
    %1549 = vmatpush1.bf16.msra.mxu0 %v1249
    %1550 = vmatprep.subr.bf16.mxu0 %v1254
    %1551 = vmatpush1.bf16.msra.mxu0 %v1253
    %1552 = vmatprep.subr.bf16.mxu0 %v1258
    %1553 = vmatpush1.bf16.msra.mxu0 %v1257
    %1554 = vmatprep.subr.bf16.mxu0 %v1262
    %1555 = vmatpush1.bf16.msra.mxu0 %v1261
    %1556 = vmatprep.subr.bf16.mxu0 %v1266
    %1557 = vmatpush1.bf16.msra.mxu0 %v1265
    %1558 = vmatprep.subr.bf16.mxu0 %v1270
    %1559 = vmatpush1.bf16.msra.mxu0 %v1269
    %1560 = vmatprep.mubr.bf16.mxu0 %v630
    %1561 = vmatmul.mubr.bf16.gmra.mrb[0].mxu0 %v629
    %v1562 = vpop.f32.mrb[0].mxu0
    %v1563 = vadd.f32 %v1520, %v1562
    %v1564 = vpop.f32.mrb[0].mxu0
    %v1565 = vadd.f32 %v1522, %v1564
    %v1566 = vpop.f32.mrb[0].mxu0
    %v1567 = vadd.f32 %v1524, %v1566
    %v1568 = vpop.f32.mrb[0].mxu0
    %v1569 = vadd.f32 %v1526, %v1568
    %1570 = vdwg.mxu0
    %v1571 = vpack.c.bf16 %v1481, %v1477
    %v1572 = vpack.c.bf16 %v1483, %v1479
    %v1573 = vpack.c.bf16 %v1567, %v1563
    %v1574 = vpack.c.bf16 %v1569, %v1565
    %v1575 = vld [vmem:[%s4] sm:$0xf]
    %v1578 = vunpack.c.l.s4 1966171168
    %v1579 = vunpack.c.0.s8 %v1578
    %v1580 = vlaneseq
    %v1581 = vshrl.u32 %v1580, 7
    %v1582 = vsub.s32 %v1579, %v1581
    %v1583 = vrot.slane %v1575, %v1582
    %v1584 = vcombine.high %v1583, %v1583
    %v1586 = vunpack.c.l.s4 1966171168
    %v1587 = vunpack.c.0.s8 %v1586
    %v1588 = vlaneseq
    %v1589 = vshrl.u32 %v1588, 7
    %v1590 = vsub.s32 %v1587, %v1589
    %v1591 = vrot.slane %v1583, %v1590
    %v1593 = vunpack.c.l.s4 1966171168
    %v1594 = vunpack.c.0.s8 %v1593
    %v1595 = vlaneseq
    %v1596 = vshrl.u32 %v1595, 7
    %v1597 = vsub.s32 %v1594, %v1596
    %v1598 = vrot.slane %v1584, %v1597
    %v1599 = vcombine.high %v1591, %v1591
    %v1600 = vcombine.high %v1598, %v1598
    %v1602 = vpack.i.b16 %v1591, %v1591
    %v1604 = vlaneseq
    %v1605 = vshrl.u32 %v1604, 7
    %v1606 = vsub.s32 0, %v1605
    %v1607 = vrot.slane %v1602, %v1606
    %v1609 = vpack.i.b16 %v1598, %v1598
    %v1611 = vlaneseq
    %v1612 = vshrl.u32 %v1611, 7
    %v1613 = vsub.s32 0, %v1612
    %v1614 = vrot.slane %v1609, %v1613
    %v1616 = vpack.i.b16 %v1599, %v1599
    %v1618 = vlaneseq
    %v1619 = vshrl.u32 %v1618, 7
    %v1620 = vsub.s32 0, %v1619
    %v1621 = vrot.slane %v1616, %v1620
    %v1623 = vpack.i.b16 %v1600, %v1600
    %v1625 = vlaneseq
    %v1626 = vshrl.u32 %v1625, 7
    %v1627 = vsub.s32 0, %v1626
    %v1628 = vrot.slane %v1623, %v1627
    %v1629 = vadd.bf16 %v1571, %v1607
    %v1630 = vadd.bf16 %v1572, %v1614
    %v1631 = vadd.bf16 %v1573, %v1621
    %v1632 = vadd.bf16 %v1574, %v1628
    %v1633 = vmax.bf16 %v1629, 0
    %v1634 = vmax.bf16 %v1630, 0
    %v1635 = vmax.bf16 %v1631, 0
    %v1636 = vmax.bf16 %v1632, 0
    %v1637 = vld [vmem:[#allocation8] sm:$0xf]
    %v1638 = vld [vmem:[#allocation8 + $0x4] sm:$0xf]
    %v1639 = vld [vmem:[#allocation8 + $0x8] sm:$0xf]
    %v1640 = vld [vmem:[#allocation8 + $0xc] sm:$0xf]
    %v1641 = vld [vmem:[#allocation8 + $0x10] sm:$0xf]
    %v1642 = vld [vmem:[#allocation8 + $0x14] sm:$0xf]
    %v1643 = vld [vmem:[#allocation8 + $0x18] sm:$0xf]
    %v1644 = vld [vmem:[#allocation8 + $0x1c] sm:$0xf]
    %v1645 = vld [vmem:[#allocation8 + $0x20] sm:$0xf]
    %v1646 = vld [vmem:[#allocation8 + $0x24] sm:$0xf]
    %v1647 = vld [vmem:[#allocation8 + $0x28] sm:$0xf]
    %v1648 = vld [vmem:[#allocation8 + $0x2c] sm:$0xf]
    %v1649 = vld [vmem:[#allocation8 + $0x30] sm:$0xf]
    %v1650 = vld [vmem:[#allocation8 + $0x34] sm:$0xf]
    %v1651 = vld [vmem:[#allocation8 + $0x38] sm:$0xf]
    %v1652 = vld [vmem:[#allocation8 + $0x3c] sm:$0xf]
    %v1653 = vld [vmem:[#allocation8 + $0x40] sm:$0xf]
    %v1654 = vld [vmem:[#allocation8 + $0x44] sm:$0xf]
    %v1655 = vld [vmem:[#allocation8 + $0x48] sm:$0xf]
    %v1656 = vld [vmem:[#allocation8 + $0x4c] sm:$0xf]
    %v1657 = vld [vmem:[#allocation8 + $0x50] sm:$0xf]
    %v1658 = vld [vmem:[#allocation8 + $0x54] sm:$0xf]
    %v1659 = vld [vmem:[#allocation8 + $0x58] sm:$0xf]
    %v1660 = vld [vmem:[#allocation8 + $0x5c] sm:$0xf]
    %v1661 = vld [vmem:[#allocation8 + $0x60] sm:$0xf]
    %v1662 = vld [vmem:[#allocation8 + $0x64] sm:$0xf]
    %v1663 = vld [vmem:[#allocation8 + $0x68] sm:$0xf]
    %v1664 = vld [vmem:[#allocation8 + $0x6c] sm:$0xf]
    %v1665 = vld [vmem:[#allocation8 + $0x70] sm:$0xf]
    %v1666 = vld [vmem:[#allocation8 + $0x74] sm:$0xf]
    %v1667 = vld [vmem:[#allocation8 + $0x78] sm:$0xf]
    %v1668 = vld [vmem:[#allocation8 + $0x7c] sm:$0xf]
    %v1669 = vld [vmem:[#allocation8 + $0x80] sm:$0xf]
    %v1670 = vld [vmem:[#allocation8 + $0x84] sm:$0xf]
    %v1671 = vld [vmem:[#allocation8 + $0x88] sm:$0xf]
    %v1672 = vld [vmem:[#allocation8 + $0x8c] sm:$0xf]
    %v1673 = vld [vmem:[#allocation8 + $0x90] sm:$0xf]
    %v1674 = vld [vmem:[#allocation8 + $0x94] sm:$0xf]
    %v1675 = vld [vmem:[#allocation8 + $0x98] sm:$0xf]
    %v1676 = vld [vmem:[#allocation8 + $0x9c] sm:$0xf]
    %v1677 = vld [vmem:[#allocation8 + $0xa0] sm:$0xf]
    %v1678 = vld [vmem:[#allocation8 + $0xa4] sm:$0xf]
    %v1679 = vld [vmem:[#allocation8 + $0xa8] sm:$0xf]
    %v1680 = vld [vmem:[#allocation8 + $0xac] sm:$0xf]
    %v1681 = vld [vmem:[#allocation8 + $0xb0] sm:$0xf]
    %v1682 = vld [vmem:[#allocation8 + $0xb4] sm:$0xf]
    %v1683 = vld [vmem:[#allocation8 + $0xb8] sm:$0xf]
    %v1684 = vld [vmem:[#allocation8 + $0xbc] sm:$0xf]
    %v1685 = vld [vmem:[#allocation8 + $0xc0] sm:$0xf]
    %v1686 = vld [vmem:[#allocation8 + $0xc4] sm:$0xf]
    %v1687 = vld [vmem:[#allocation8 + $0xc8] sm:$0xf]
    %v1688 = vld [vmem:[#allocation8 + $0xcc] sm:$0xf]
    %v1689 = vld [vmem:[#allocation8 + $0xd0] sm:$0xf]
    %v1690 = vld [vmem:[#allocation8 + $0xd4] sm:$0xf]
    %v1691 = vld [vmem:[#allocation8 + $0xd8] sm:$0xf]
    %v1692 = vld [vmem:[#allocation8 + $0xdc] sm:$0xf]
    %v1693 = vld [vmem:[#allocation8 + $0xe0] sm:$0xf]
    %v1694 = vld [vmem:[#allocation8 + $0xe4] sm:$0xf]
    %v1695 = vld [vmem:[#allocation8 + $0xe8] sm:$0xf]
    %v1696 = vld [vmem:[#allocation8 + $0xec] sm:$0xf]
    %v1697 = vld [vmem:[#allocation8 + $0xf0] sm:$0xf]
    %v1698 = vld [vmem:[#allocation8 + $0xf4] sm:$0xf]
    %v1699 = vld [vmem:[#allocation8 + $0xf8] sm:$0xf]
    %v1700 = vld [vmem:[#allocation8 + $0xfc] sm:$0xf]
    %v1701 = vld [vmem:[%s6] sm:$0x1]
    %v1703 = vlaneseq
    %v1704 = vshrl.u32 %v1703, 7
    %v1705 = vsub.s32 0, %v1704
    %v1706 = vrot.slane %v1701, %v1705
    %v1772 = vunpack.c.l.b16 %v1637
    %v1773 = vunpack.c.l.b16 %v1638
    %v1774 = vunpack.c.l.b16 %v1639
    %v1775 = vunpack.c.l.b16 %v1640
    %v1776 = vunpack.c.l.b16 %v1641
    %v1777 = vunpack.c.l.b16 %v1642
    %v1778 = vunpack.c.l.b16 %v1643
    %v1779 = vunpack.c.l.b16 %v1644
    %v1780 = vunpack.c.l.b16 %v1645
    %v1781 = vunpack.c.l.b16 %v1646
    %v1782 = vunpack.c.l.b16 %v1647
    %v1783 = vunpack.c.l.b16 %v1648
    %v1784 = vunpack.c.l.b16 %v1649
    %v1785 = vunpack.c.l.b16 %v1650
    %v1786 = vunpack.c.l.b16 %v1651
    %v1787 = vunpack.c.l.b16 %v1652
    %v1788 = vunpack.c.l.b16 %v1653
    %v1789 = vunpack.c.l.b16 %v1654
    %v1790 = vunpack.c.l.b16 %v1655
    %v1791 = vunpack.c.l.b16 %v1656
    %v1792 = vunpack.c.l.b16 %v1657
    %v1793 = vunpack.c.l.b16 %v1658
    %v1794 = vunpack.c.l.b16 %v1659
    %v1795 = vunpack.c.l.b16 %v1660
    %v1796 = vunpack.c.l.b16 %v1661
    %v1797 = vunpack.c.l.b16 %v1662
    %v1798 = vunpack.c.l.b16 %v1663
    %v1799 = vunpack.c.l.b16 %v1664
    %v1800 = vunpack.c.l.b16 %v1665
    %v1801 = vunpack.c.l.b16 %v1666
    %v1802 = vunpack.c.l.b16 %v1667
    %v1803 = vunpack.c.l.b16 %v1668
    %v1804 = vunpack.c.l.b16 %v1669
    %v1805 = vunpack.c.l.b16 %v1670
    %v1806 = vunpack.c.l.b16 %v1671
    %v1807 = vunpack.c.l.b16 %v1672
    %v1808 = vunpack.c.l.b16 %v1673
    %v1809 = vunpack.c.l.b16 %v1674
    %v1810 = vunpack.c.l.b16 %v1675
    %v1811 = vunpack.c.l.b16 %v1676
    %v1812 = vunpack.c.l.b16 %v1677
    %v1813 = vunpack.c.l.b16 %v1678
    %v1814 = vunpack.c.l.b16 %v1679
    %v1815 = vunpack.c.l.b16 %v1680
    %v1816 = vunpack.c.l.b16 %v1681
    %v1817 = vunpack.c.l.b16 %v1682
    %v1818 = vunpack.c.l.b16 %v1683
    %v1819 = vunpack.c.l.b16 %v1684
    %v1820 = vunpack.c.l.b16 %v1685
    %v1821 = vunpack.c.l.b16 %v1686
    %v1822 = vunpack.c.l.b16 %v1687
    %v1823 = vunpack.c.l.b16 %v1688
    %v1824 = vunpack.c.l.b16 %v1689
    %v1825 = vunpack.c.l.b16 %v1690
    %v1826 = vunpack.c.l.b16 %v1691
    %v1827 = vunpack.c.l.b16 %v1692
    %v1828 = vunpack.c.l.b16 %v1693
    %v1829 = vunpack.c.l.b16 %v1694
    %v1830 = vunpack.c.l.b16 %v1695
    %v1831 = vunpack.c.l.b16 %v1696
    %v1832 = vunpack.c.l.b16 %v1697
    %v1833 = vunpack.c.l.b16 %v1698
    %v1834 = vunpack.c.l.b16 %v1699
    %v1835 = vunpack.c.l.b16 %v1700
    %v1836 = vpack.c.b16 %v1773, %v1772
    %v1837 = vpack.c.b16 %v1775, %v1774
    %v1838 = vpack.c.b16 %v1777, %v1776
    %v1839 = vpack.c.b16 %v1779, %v1778
    %v1840 = vpack.c.b16 %v1781, %v1780
    %v1841 = vpack.c.b16 %v1783, %v1782
    %v1842 = vpack.c.b16 %v1785, %v1784
    %v1843 = vpack.c.b16 %v1787, %v1786
    %v1844 = vpack.c.b16 %v1789, %v1788
    %v1845 = vpack.c.b16 %v1791, %v1790
    %v1846 = vpack.c.b16 %v1793, %v1792
    %v1847 = vpack.c.b16 %v1795, %v1794
    %v1848 = vpack.c.b16 %v1797, %v1796
    %v1849 = vpack.c.b16 %v1799, %v1798
    %v1850 = vpack.c.b16 %v1801, %v1800
    %v1851 = vpack.c.b16 %v1803, %v1802
    %v1852 = vpack.c.b16 %v1805, %v1804
    %v1853 = vpack.c.b16 %v1807, %v1806
    %v1854 = vpack.c.b16 %v1809, %v1808
    %v1855 = vpack.c.b16 %v1811, %v1810
    %v1856 = vpack.c.b16 %v1813, %v1812
    %v1857 = vpack.c.b16 %v1815, %v1814
    %v1858 = vpack.c.b16 %v1817, %v1816
    %v1859 = vpack.c.b16 %v1819, %v1818
    %v1860 = vpack.c.b16 %v1821, %v1820
    %v1861 = vpack.c.b16 %v1823, %v1822
    %v1862 = vpack.c.b16 %v1825, %v1824
    %v1863 = vpack.c.b16 %v1827, %v1826
    %v1864 = vpack.c.b16 %v1829, %v1828
    %v1865 = vpack.c.b16 %v1831, %v1830
    %v1866 = vpack.c.b16 %v1833, %v1832
    %v1867 = vpack.c.b16 %v1835, %v1834
    %1900 = vmatprep.subr.bf16.mxu0 0
    %1901 = vmatpush1.bf16.msra.mxu0 %v1836
    %1902 = vmatprep.subr.bf16.mxu0 0
    %1903 = vmatpush1.bf16.msra.mxu0 %v1837
    %1904 = vmatprep.subr.bf16.mxu0 0
    %1905 = vmatpush1.bf16.msra.mxu0 %v1838
    %1906 = vmatprep.subr.bf16.mxu0 0
    %1907 = vmatpush1.bf16.msra.mxu0 %v1839
    %1908 = vmatprep.subr.bf16.mxu0 0
    %1909 = vmatpush1.bf16.msra.mxu0 %v1840
    %1910 = vmatprep.subr.bf16.mxu0 0
    %1911 = vmatpush1.bf16.msra.mxu0 %v1841
    %1912 = vmatprep.subr.bf16.mxu0 0
    %1913 = vmatpush1.bf16.msra.mxu0 %v1842
    %1914 = vmatprep.subr.bf16.mxu0 0
    %1915 = vmatpush1.bf16.msra.mxu0 %v1843
    %1916 = vmatprep.subr.bf16.mxu0 0
    %1917 = vmatpush1.bf16.msra.mxu0 %v1844
    %1918 = vmatprep.subr.bf16.mxu0 0
    %1919 = vmatpush1.bf16.msra.mxu0 %v1845
    %1920 = vmatprep.subr.bf16.mxu0 0
    %1921 = vmatpush1.bf16.msra.mxu0 %v1846
    %1922 = vmatprep.subr.bf16.mxu0 0
    %1923 = vmatpush1.bf16.msra.mxu0 %v1847
    %1924 = vmatprep.subr.bf16.mxu0 0
    %1925 = vmatpush1.bf16.msra.mxu0 %v1848
    %1926 = vmatprep.subr.bf16.mxu0 0
    %1927 = vmatpush1.bf16.msra.mxu0 %v1849
    %1928 = vmatprep.subr.bf16.mxu0 0
    %1929 = vmatpush1.bf16.msra.mxu0 %v1850
    %1930 = vmatprep.subr.bf16.mxu0 0
    %1931 = vmatpush1.bf16.msra.mxu0 %v1851
    %1932 = vmatprep.mubr.bf16.mxu0 %v1634
    %1933 = vmatmul.mubr.bf16.gmra.mrb[0].mxu0 %v1633
    %v1934 = vpop.f32.mrb[0].mxu0
    %v1935 = vadd.f32 %v1706, %v1934
    %v1936 = vpop.f32.mrb[0].mxu0
    %v1937 = vpop.f32.mrb[0].mxu0
    %v1938 = vadd.f32 %v1706, %v1937
    %v1939 = vpop.f32.mrb[0].mxu0
    %1940 = vdwg.mxu0
    %1941 = vmatprep.subr.bf16.mxu0 0
    %1942 = vmatpush1.bf16.msra.mxu0 %v1852
    %1943 = vmatprep.subr.bf16.mxu0 0
    %1944 = vmatpush1.bf16.msra.mxu0 %v1853
    %1945 = vmatprep.subr.bf16.mxu0 0
    %1946 = vmatpush1.bf16.msra.mxu0 %v1854
    %1947 = vmatprep.subr.bf16.mxu0 0
    %1948 = vmatpush1.bf16.msra.mxu0 %v1855
    %1949 = vmatprep.subr.bf16.mxu0 0
    %1950 = vmatpush1.bf16.msra.mxu0 %v1856
    %1951 = vmatprep.subr.bf16.mxu0 0
    %1952 = vmatpush1.bf16.msra.mxu0 %v1857
    %1953 = vmatprep.subr.bf16.mxu0 0
    %1954 = vmatpush1.bf16.msra.mxu0 %v1858
    %1955 = vmatprep.subr.bf16.mxu0 0
    %1956 = vmatpush1.bf16.msra.mxu0 %v1859
    %1957 = vmatprep.subr.bf16.mxu0 0
    %1958 = vmatpush1.bf16.msra.mxu0 %v1860
    %1959 = vmatprep.subr.bf16.mxu0 0
    %1960 = vmatpush1.bf16.msra.mxu0 %v1861
    %1961 = vmatprep.subr.bf16.mxu0 0
    %1962 = vmatpush1.bf16.msra.mxu0 %v1862
    %1963 = vmatprep.subr.bf16.mxu0 0
    %1964 = vmatpush1.bf16.msra.mxu0 %v1863
    %1965 = vmatprep.subr.bf16.mxu0 0
    %1966 = vmatpush1.bf16.msra.mxu0 %v1864
    %1967 = vmatprep.subr.bf16.mxu0 0
    %1968 = vmatpush1.bf16.msra.mxu0 %v1865
    %1969 = vmatprep.subr.bf16.mxu0 0
    %1970 = vmatpush1.bf16.msra.mxu0 %v1866
    %1971 = vmatprep.subr.bf16.mxu0 0
    %1972 = vmatpush1.bf16.msra.mxu0 %v1867
    %1973 = vmatprep.mubr.bf16.mxu0 %v1636
    %1974 = vmatmul.mubr.bf16.gmra.mrb[0].mxu0 %v1635
    %v1975 = vpop.f32.mrb[0].mxu0
    %v1976 = vadd.f32 %v1935, %v1975
    %v1977 = vpop.f32.mrb[0].mxu0
    %v1978 = vpop.f32.mrb[0].mxu0
    %v1979 = vadd.f32 %v1938, %v1978
    %v1980 = vpop.f32.mrb[0].mxu0
    %1981 = vdwg.mxu0
    %v1982 = vmul.f32 %v1976, 0.5
    %v1983 = vmul.f32 %v1979, 0.5
    %v1984 = vtanh.pop %v1982
    %v1985 = vtanh.pop %v1983
    %v1986 = vmul.f32 %v1984, 0.5
    %v1987 = vmul.f32 %v1985, 0.5
    %v1988 = vadd.f32 %v1986, 0.5
    %v1989 = vadd.f32 %v1987, 0.5
    %1990 = vst [vmem:[#allocation10] sm:$0xff] %v1988
    %1991 = vst [vmem:[#allocation10 + $0x8] sm:$0xff] %v1989
    // Predicated region
    $region46: #{tpu_custom_call.1} parent=1 // pred_check
      _
    $region47: #{tpu_custom_call.1} parent=1 // pred_check_branch
      %1993 = sbr.rel (0) target = $region49
    $region48: #{tpu_custom_call.1} parent=1 // pred_region
      %s1995 = ssub.s32 256, 256
      %1996 = vsyncadd [#allocation4], %s1995
      %s1997 = sshll.u32 [#allocation10], 4
      %s1998 = int_to_ptr.vmem [resolvable:$true] %s1997
      %2003 = dma.vmem_to_hbm [thread:$0]  %s1998, 256, %s7, [#allocation4], 128, 128, 8
    $region49: #{tpu_custom_call.1} parent=1 // pred_fallthru
      _
    // Predicated region
    $region50: #{tpu_custom_call.1} parent=1 // pred_check
      _
    $region51: #{tpu_custom_call.1} parent=1 // pred_check_branch
      %2005 = sbr.rel (0) target = $region53
    $region52: #{tpu_custom_call.1} parent=1 // pred_region
      %2006 = dma.done [#allocation4], 256
    $region53: #{tpu_custom_call.1} parent=1 // pred_fallthru
      _
    %2007 = vsyncpa [#allocation3], 1
    %2008 = vsyncpa [#allocation6], 1
    %2009 = vsyncpa [#allocation9], 1
    %2010 = vsyncpa [#allocation4], 1

</llo_original>
